<compile_context>
chip_gen: v7x
topology: tpu7x:2x2x1
jax: 0.10.0
libtpu: 0.0.40
codegen_flags: <defaults>
</compile_context>

<pallas_src>
import functools

import numpy as np
import jax
import jax.numpy as jnp
from jax.experimental import pallas as pl
from jax.experimental.pallas import tpu as pltpu


def _detect_kernel(boxes_row_ref, priors_row_ref, boxes_col_ref, priors_col_ref,
                   scores_ref, probs_ref, dec_ref, mask_ref,
                   *, var_center, var_size, overlap_threshold):
    i = pl.program_id(2)            # row-tile index (innermost, "arbitrary" grid axis)

    # ---------------- column-layout decode: lane-dense (1, TN) vectors ----------------
    locc = boxes_col_ref[0]         # (4, TN)
    pric = priors_col_ref[...]      # (4, TN)
    cxc = pric[0:1, :] + locc[0:1, :] * (var_center * pric[2:3, :])
    cyc = pric[1:2, :] + locc[1:2, :] * (var_center * pric[3:4, :])
    wc = pric[2:3, :] * jnp.exp(locc[2:3, :] * var_size)
    hc = pric[3:4, :] * jnp.exp(locc[3:4, :] * var_size)
    x1c = cxc - 0.5 * wc
    y1c = cyc - 0.5 * hc
    x2c = cxc + 0.5 * wc
    y2c = cyc + 0.5 * hc
    area_c = (x2c - x1c) * (y2c - y1c)               # (1, TN)

    # probs / decoded output blocks are resident across the row-tile axis;
    # write them once per (batch, column-tile).
    @pl.when(i == 0)
    def _():
        # softmax over classes: C on sublanes, priors on lanes (lane-dense stores)
        logits = scores_ref[0]                       # (C, TN)
        m = jnp.max(logits, axis=0, keepdims=True)
        e = jnp.exp(logits - m)
        s = jnp.sum(e, axis=0, keepdims=True)
        probs_ref[0] = e * pl.reciprocal(s, approx=True)
        dec_ref[0] = jnp.concatenate([x1c, y1c, x2c, y2c], axis=0)   # (4, TN) xyxy

    # ---------------- row-layout decode: sublane (TM, 1) vectors -----------------------
    locr = boxes_row_ref[0]         # (TM, 4)
    prir = priors_row_ref[...]      # (TM, 4)
    cxr = prir[:, 0:1] + locr[:, 0:1] * (var_center * prir[:, 2:3])
    cyr = prir[:, 1:2] + locr[:, 1:2] * (var_center * prir[:, 3:4])
    wr = prir[:, 2:3] * jnp.exp(locr[:, 2:3] * var_size)
    hr = prir[:, 3:4] * jnp.exp(locr[:, 3:4] * var_size)
    x1r = cxr - 0.5 * wr
    y1r = cyr - 0.5 * hr
    x2r = cxr + 0.5 * wr
    y2r = cyr + 0.5 * hr
    area_r = (x2r - x1r) * (y2r - y1r)               # (TM, 1)

    # ---------------- pairwise overlap tile (TM, TN): pure VPU, no transposes ----------
    ix1 = jnp.maximum(x1r, x1c)                      # (TM, TN) via broadcast
    iy1 = jnp.maximum(y1r, y1c)
    ix2 = jnp.minimum(x2r, x2c)
    iy2 = jnp.minimum(y2r, y2c)
    inter = jnp.maximum(ix2 - ix1, 0.0) * jnp.maximum(iy2 - iy1, 0.0)
    union = area_r + area_c - inter
    # iou > thr  <=>  inter > thr * union  (union > 0): exact f32 compare, no divide,
    # cast to uint8 only at the store.
    mask_ref[0] = (inter > overlap_threshold * union).astype(jnp.uint8)


def _choose_tile(p):
    # <=512 keeps tiles comfortably inside v7x's smaller VMEM while already sitting
    # near the HBM-writeback roofline on v5e/v6e.
    for t in (512, 256, 128):
        if p >= t:
            return t
    return 128


def _detect_pallas(pred_boxes, pred_scores, priors, var_center, var_size,
                   nms_overlap_threshold=0.0):
    """Returns (probs (B,C,Pp) f32, decoded (B,4,Pp) f32 xyxy, overlap mask (B,Pp,Pp) u8)."""
    B, P, C = pred_scores.shape
    tile = _choose_tile(P)
    P_pad = ((P + tile - 1) // tile) * tile
    TM = TN = tile

    pb = jnp.asarray(pred_boxes, jnp.float32)
    ps = jnp.asarray(pred_scores, jnp.float32)
    pr = jnp.asarray(priors, jnp.float32)
    if P_pad != P:
        pad = P_pad - P
        pb = jnp.pad(pb, ((0, 0), (0, pad), (0, 0)))
        ps = jnp.pad(ps, ((0, 0), (0, pad), (0, 0)))
        pr = jnp.pad(pr, ((0, pad), (0, 0)))

    pb_t = jnp.transpose(pb, (0, 2, 1))     # (B, 4, P_pad)  lane-dense column layout
    ps_t = jnp.transpose(ps, (0, 2, 1))     # (B, C, P_pad)  lane-dense column layout
    pr_t = jnp.transpose(pr, (1, 0))        # (4, P_pad)

    ni = P_pad // TM
    nj = P_pad // TN

    kernel = functools.partial(
        _detect_kernel,
        var_center=float(var_center),
        var_size=float(var_size),
        overlap_threshold=float(nms_overlap_threshold))

    out_shapes = (
        jax.ShapeDtypeStruct((B, C, P_pad), jnp.float32),     # class probabilities
        jax.ShapeDtypeStruct((B, 4, P_pad), jnp.float32),     # decoded xyxy boxes
        jax.ShapeDtypeStruct((B, P_pad, P_pad), jnp.uint8),   # overlap mask (iou > thr)
    )

    cost = pl.CostEstimate(
        flops=int(B * P_pad * P_pad * 13 + B * P_pad * (4 * C + 60 * (ni + nj))),
        transcendentals=int(B * P_pad * (C + 1 + 2 * (ni + nj))),
        bytes_accessed=int(B * P_pad * P_pad                     # uint8 mask out
                           + B * P_pad * (C + 4) * 4             # probs + decoded out
                           + B * P_pad * (C + 8) * 4             # scores + boxes (2 layouts) in
                           + P_pad * 8 * 4))                     # priors (2 layouts) in

    probs, dec, mask = pl.pallas_call(
        kernel,
        out_shape=out_shapes,
        grid=(B, nj, ni),
        in_specs=[
            pl.BlockSpec((1, TM, 4), lambda b, j, i: (b, i, 0)),   # boxes, row layout
            pl.BlockSpec((TM, 4), lambda b, j, i: (i, 0)),         # priors, row layout
            pl.BlockSpec((1, 4, TN), lambda b, j, i: (b, 0, j)),   # boxes, col layout
            pl.BlockSpec((4, TN), lambda b, j, i: (0, j)),         # priors, col layout
            pl.BlockSpec((1, C, TN), lambda b, j, i: (b, 0, j)),   # scores, col layout
        ],
        out_specs=(
            pl.BlockSpec((1, C, TN), lambda b, j, i: (b, 0, j)),
            pl.BlockSpec((1, 4, TN), lambda b, j, i: (b, 0, j)),
            pl.BlockSpec((1, TM, TN), lambda b, j, i: (b, i, j)),
        ),
        compiler_params=pltpu.CompilerParams(
            dimension_semantics=("parallel", "parallel", "arbitrary"),
            vmem_limit_bytes=32 * 1024 * 1024),
        cost_estimate=cost,
    )(pb, pr, pb_t, pr_t, ps_t)
    return probs, dec, mask


def _greedy_nms(overlap_mask):
    """Greedy NMS over boxes already sorted by descending score.
    overlap_mask[i, j] is (iou(i, j) > threshold). Returns kept indices."""
    n = overlap_mask.shape[0]
    suppress = np.zeros(n, dtype=bool)
    for i in range(n):
        if suppress[i]:
            continue
        suppress |= overlap_mask[i].astype(bool)
        suppress[i] = False
    return np.nonzero(~suppress)[0]


class Detection:
    """JAX/Pallas port of the PyTorch Detection module."""

    def __init__(self, detection_config, prior_boxes, num_classes, variance):
        self.min_score = detection_config['min_score_threshold']
        self.max_overlap = detection_config['max_iou_threshold']
        self.top_k = detection_config['top_k_result']
        self.prior_boxes = prior_boxes
        self.num_classes = num_classes
        self.variance = variance

    def forward(self, predicted_boxes, predicted_scores):
        B, P, C = predicted_scores.shape
        assert self.prior_boxes.shape[0] == predicted_boxes.shape[1] == P

        # Reference code calls nms(..., 0): literal overlap threshold of 0, so the kernel
        # emits the (iou > 0) mask directly.
        probs, decoded, overlap = jax.block_until_ready(
            _detect_pallas(predicted_boxes, predicted_scores, self.prior_boxes,
                           self.variance['center'], self.variance['size'],
                           nms_overlap_threshold=0.0))
        probs = np.asarray(probs)[:, :, :P]         # (B, C, P)
        decoded = np.asarray(decoded)[:, :, :P]     # (B, 4, P) xyxy
        overlap = np.asarray(overlap)[:, :P, :P]    # (B, P, P) uint8

        # TODO(synk): the per-class dynamic filtering / sort / greedy-NMS / top-k loop
        # produces ragged, data-dependent shapes and therefore stays on the host (numpy).
        all_boxes, all_labels, all_scores = [], [], []
        for b in range(B):
            decoded_b = decoded[b].T                # (P, 4)
            image_boxes, image_labels, image_scores = [], [], []
            for c in range(1, self.num_classes):
                cls_scores = probs[b, c, :]
                keep_idx = np.nonzero(cls_scores > self.min_score)[0]
                if keep_idx.size == 0:
                    continue
                cls_scores = cls_scores[keep_idx]
                order = np.argsort(-cls_scores, kind="stable")
                cls_scores = cls_scores[order]
                sel = keep_idx[order]
                cls_boxes = decoded_b[sel]
                sub_mask = overlap[b][np.ix_(sel, sel)]
                keep = _greedy_nms(sub_mask)
                image_boxes.append(cls_boxes[keep])
                image_labels.append(np.full(len(keep), c, dtype=np.int64))
                image_scores.append(cls_scores[keep])
            if len(image_boxes) == 0:
                image_boxes.append(np.array([[0.0, 0.0, 1.0, 1.0]], np.float32))
                image_labels.append(np.array([0], np.int64))
                image_scores.append(np.array([0.0], np.float32))
            image_boxes = np.concatenate(image_boxes, axis=0)
            image_labels = np.concatenate(image_labels, axis=0)
            image_scores = np.concatenate(image_scores, axis=0)
            if image_scores.shape[0] > self.top_k:
                order = np.argsort(-image_scores, kind="stable")
                image_scores = image_scores[order][:self.top_k]
                image_boxes = image_boxes[order][:self.top_k]
                image_labels = image_labels[order][:self.top_k]
            all_boxes.append(image_boxes)
            all_labels.append(image_labels)
            all_scores.append(image_scores)
        return all_boxes, all_labels, all_scores


if __name__ == "__main__":
    B, C = 2, 8          # batch, num_classes (class 0 = background)
    P = 300              # priors; deliberately not a multiple of 128 to exercise padding/tiling

    # Deterministic priors: a coarse grid of 0.3x0.3 boxes in center form.
    cx = ((np.arange(P, dtype=np.float32) % 20) + 0.5) / 20.0
    cy = ((np.arange(P, dtype=np.float32) // 20) + 0.5) / 20.0
    priors = np.stack([cx, cy, np.full(P, 0.3, np.float32), np.full(P, 0.3, np.float32)], axis=1)
    priors = jnp.asarray(priors, jnp.float32)

    key = jax.random.PRNGKey(0)
    k1, k2 = jax.random.split(key)
    predicted_boxes = jax.random.normal(k1, (B, P, 4), jnp.float32) * 0.5
    predicted_scores = jax.random.normal(k2, (B, P, C), jnp.float32) * 2.0

    detection_config = {
        'min_score_threshold': 0.2,
        'max_iou_threshold': 0.45,
        'top_k_result': 10,
    }
    variance = {'center': 0.1, 'size': 0.2}   # standard SSD variances

    det = Detection(detection_config, priors, num_classes=C, variance=variance)
    boxes, labels, scores = det.forward(predicted_boxes, predicted_scores)

    # ---------------- pure-numpy reference check of the kernel outputs ----------------
    pbn = np.asarray(predicted_boxes)
    psn = np.asarray(predicted_scores)
    prn = np.asarray(priors)
    e = np.exp(psn - psn.max(axis=2, keepdims=True))
    ref_probs = (e / e.sum(axis=2, keepdims=True)).transpose(0, 2, 1)          # (B, C, P)
    dcx = prn[None, :, 0] + pbn[:, :, 0] * variance['center'] * prn[None, :, 2]
    dcy = prn[None, :, 1] + pbn[:, :, 1] * variance['center'] * prn[None, :, 3]
    dw = prn[None, :, 2] * np.exp(pbn[:, :, 2] * variance['size'])
    dh = prn[None, :, 3] * np.exp(pbn[:, :, 3] * variance['size'])
    ref_dec = np.stack([dcx - 0.5 * dw, dcy - 0.5 * dh, dcx + 0.5 * dw, dcy + 0.5 * dh], axis=1)

    probs_dev, dec_dev, mask_dev = jax.block_until_ready(
        _detect_pallas(predicted_boxes, predicted_scores, priors,
                       variance['center'], variance['size'], 0.0))
    probs_dev = np.asarray(probs_dev)[:, :, :P]
    dec_dev = np.asarray(dec_dev)[:, :, :P]
    mask_dev = np.asarray(mask_dev)[:, :P, :P]

    assert np.allclose(probs_dev, ref_probs, atol=3e-3, rtol=3e-3)   # approx reciprocal
    assert np.allclose(dec_dev, ref_dec, atol=1e-4, rtol=1e-4)
    x1, y1, x2, y2 = ref_dec[:, 0], ref_dec[:, 1], ref_dec[:, 2], ref_dec[:, 3]
    iw = np.maximum(np.minimum(x2[:, :, None], x2[:, None, :])
                    - np.maximum(x1[:, :, None], x1[:, None, :]), 0.0)
    ih = np.maximum(np.minimum(y2[:, :, None], y2[:, None, :])
                    - np.maximum(y1[:, :, None], y1[:, None, :]), 0.0)
    ref_mask = ((iw * ih) > 0.0).astype(np.uint8)
    assert (mask_dev != ref_mask).mean() < 1e-3

    # Basic sanity on the detection outputs.
    assert len(boxes) == len(labels) == len(scores) == B
    for bb, ll, ss in zip(boxes, labels, scores):
        assert bb.shape[0] == ll.shape[0] == ss.shape[0]
        assert bb.shape[1] == 4
        assert np.isfinite(bb).all() and np.isfinite(ss).all()

    print("KERNEL_OK")
</pallas_src>

<mosaic_0001>
module attributes {stable_mosaic.version = 11 : i64} {
  func.func @_detect_kernel(%arg0: i32, %arg1: i32, %arg2: i32, %arg3: memref<1x256x4xf32, #tpu.memory_space<vmem>>, %arg4: memref<256x4xf32, #tpu.memory_space<vmem>>, %arg5: memref<1x4x256xf32, #tpu.memory_space<vmem>>, %arg6: memref<4x256xf32, #tpu.memory_space<vmem>>, %arg7: memref<1x8x256xf32, #tpu.memory_space<vmem>>, %arg8: memref<1x8x256xf32, #tpu.memory_space<vmem>>, %arg9: memref<1x4x256xf32, #tpu.memory_space<vmem>>, %arg10: memref<1x256x256xi8, #tpu.memory_space<vmem>>) attributes {dimension_semantics = [#tpu.dimension_semantics<parallel>, #tpu.dimension_semantics<parallel>, #tpu.dimension_semantics<arbitrary>], iteration_bounds = array<i64: 2, 2, 2>, scalar_prefetch = 0 : i64, scratch_operands = 0 : i64, tpu.core_type = #tpu.core_type<tc>, window_params = [{transform_indices = @transform_0, window_bounds = array<i64: 1, 256, 4>}, {transform_indices = @transform_1, window_bounds = array<i64: 256, 4>}, {transform_indices = @transform_2, window_bounds = array<i64: 1, 4, 256>}, {transform_indices = @transform_3, window_bounds = array<i64: 4, 256>}, {transform_indices = @transform_4, window_bounds = array<i64: 1, 8, 256>}, {transform_indices = @transform_5, window_bounds = array<i64: 1, 8, 256>}, {transform_indices = @transform_6, window_bounds = array<i64: 1, 4, 256>}, {transform_indices = @transform_7, window_bounds = array<i64: 1, 256, 256>}]} {
    %c0 = arith.constant 0 : index
    %c0_0 = arith.constant 0 : index
    %c0_1 = arith.constant 0 : index
    %0 = vector.load %arg5[%c0, %c0_0, %c0_1] : memref<1x4x256xf32, #tpu.memory_space<vmem>>, vector<1x4x256xf32>
    %1 = vector.shape_cast %0 : vector<1x4x256xf32> to vector<4x256xf32>
    %c0_2 = arith.constant 0 : index
    %c0_3 = arith.constant 0 : index
    %2 = vector.load %arg6[%c0_2, %c0_3] : memref<4x256xf32, #tpu.memory_space<vmem>>, vector<4x256xf32>
    %3 = vector.extract_strided_slice %2 {offsets = [0, 0], sizes = [1, 256], strides = [1, 1]} : vector<4x256xf32> to vector<1x256xf32>
    %4 = vector.extract_strided_slice %1 {offsets = [0, 0], sizes = [1, 256], strides = [1, 1]} : vector<4x256xf32> to vector<1x256xf32>
    %5 = vector.extract_strided_slice %2 {offsets = [2, 0], sizes = [1, 256], strides = [1, 1]} : vector<4x256xf32> to vector<1x256xf32>
    %cst = arith.constant 1.000000e-01 : f32
    %6 = vector.broadcast %cst : f32 to vector<1x256xf32>
    %7 = arith.mulf %6, %5 : vector<1x256xf32>
    %8 = arith.mulf %4, %7 : vector<1x256xf32>
    %9 = arith.addf %3, %8 : vector<1x256xf32>
    %10 = vector.extract_strided_slice %2 {offsets = [1, 0], sizes = [1, 256], strides = [1, 1]} : vector<4x256xf32> to vector<1x256xf32>
    %11 = vector.extract_strided_slice %1 {offsets = [1, 0], sizes = [1, 256], strides = [1, 1]} : vector<4x256xf32> to vector<1x256xf32>
    %12 = vector.extract_strided_slice %2 {offsets = [3, 0], sizes = [1, 256], strides = [1, 1]} : vector<4x256xf32> to vector<1x256xf32>
    %cst_4 = arith.constant 1.000000e-01 : f32
    %13 = vector.broadcast %cst_4 : f32 to vector<1x256xf32>
    %14 = arith.mulf %13, %12 : vector<1x256xf32>
    %15 = arith.mulf %11, %14 : vector<1x256xf32>
    %16 = arith.addf %10, %15 : vector<1x256xf32>
    %17 = vector.extract_strided_slice %2 {offsets = [2, 0], sizes = [1, 256], strides = [1, 1]} : vector<4x256xf32> to vector<1x256xf32>
    %18 = vector.extract_strided_slice %1 {offsets = [2, 0], sizes = [1, 256], strides = [1, 1]} : vector<4x256xf32> to vector<1x256xf32>
    %cst_5 = arith.constant 2.000000e-01 : f32
    %19 = vector.broadcast %cst_5 : f32 to vector<1x256xf32>
    %20 = arith.mulf %18, %19 : vector<1x256xf32>
    %21 = math.exp %20 : vector<1x256xf32>
    %22 = arith.mulf %17, %21 : vector<1x256xf32>
    %23 = vector.extract_strided_slice %2 {offsets = [3, 0], sizes = [1, 256], strides = [1, 1]} : vector<4x256xf32> to vector<1x256xf32>
    %24 = vector.extract_strided_slice %1 {offsets = [3, 0], sizes = [1, 256], strides = [1, 1]} : vector<4x256xf32> to vector<1x256xf32>
    %cst_6 = arith.constant 2.000000e-01 : f32
    %25 = vector.broadcast %cst_6 : f32 to vector<1x256xf32>
    %26 = arith.mulf %24, %25 : vector<1x256xf32>
    %27 = math.exp %26 : vector<1x256xf32>
    %28 = arith.mulf %23, %27 : vector<1x256xf32>
    %cst_7 = arith.constant 5.000000e-01 : f32
    %29 = vector.broadcast %cst_7 : f32 to vector<1x256xf32>
    %30 = arith.mulf %29, %22 : vector<1x256xf32>
    %31 = arith.subf %9, %30 : vector<1x256xf32>
    %cst_8 = arith.constant 5.000000e-01 : f32
    %32 = vector.broadcast %cst_8 : f32 to vector<1x256xf32>
    %33 = arith.mulf %32, %28 : vector<1x256xf32>
    %34 = arith.subf %16, %33 : vector<1x256xf32>
    %cst_9 = arith.constant 5.000000e-01 : f32
    %35 = vector.broadcast %cst_9 : f32 to vector<1x256xf32>
    %36 = arith.mulf %35, %22 : vector<1x256xf32>
    %37 = arith.addf %9, %36 : vector<1x256xf32>
    %cst_10 = arith.constant 5.000000e-01 : f32
    %38 = vector.broadcast %cst_10 : f32 to vector<1x256xf32>
    %39 = arith.mulf %38, %28 : vector<1x256xf32>
    %40 = arith.addf %16, %39 : vector<1x256xf32>
    %41 = arith.subf %37, %31 : vector<1x256xf32>
    %42 = arith.subf %40, %34 : vector<1x256xf32>
    %43 = arith.mulf %41, %42 : vector<1x256xf32>
    %c0_i32 = arith.constant 0 : i32
    %44 = arith.cmpi eq, %arg2, %c0_i32 : i32
    %45 = arith.extui %44 : i1 to i32
    %c0_i32_11 = arith.constant 0 : i32
    %46 = arith.cmpi ne, %45, %c0_i32_11 : i32
    scf.if %46 {
      %c0_31 = arith.constant 0 : index
      %c0_32 = arith.constant 0 : index
      %c0_33 = arith.constant 0 : index
      %121 = vector.load %arg7[%c0_31, %c0_32, %c0_33] : memref<1x8x256xf32, #tpu.memory_space<vmem>>, vector<1x8x256xf32>
      %122 = vector.shape_cast %121 : vector<1x8x256xf32> to vector<8x256xf32>
      %cst_34 = arith.constant dense<0xFF800000> : vector<256xf32>
      %123 = vector.multi_reduction <maximumf>, %122, %cst_34 [0] : vector<8x256xf32> to vector<256xf32>
      %124 = vector.shape_cast %123 : vector<256xf32> to vector<1x256xf32>
      %125 = vector.broadcast %124 : vector<1x256xf32> to vector<8x256xf32>
      %126 = arith.subf %122, %125 : vector<8x256xf32>
      %127 = math.exp %126 : vector<8x256xf32>
      %cst_35 = arith.constant dense<0.000000e+00> : vector<256xf32>
      %128 = vector.multi_reduction <add>, %127, %cst_35 [0] : vector<8x256xf32> to vector<256xf32>
      %129 = vector.shape_cast %128 : vector<256xf32> to vector<1x256xf32>
      %130 = tpu.reciprocal %129 {approx = true} : vector<1x256xf32> -> vector<1x256xf32>
      %131 = vector.broadcast %130 : vector<1x256xf32> to vector<8x256xf32>
      %132 = arith.mulf %127, %131 : vector<8x256xf32>
      %c0_36 = arith.constant 0 : index
      %c0_37 = arith.constant 0 : index
      %c0_38 = arith.constant 0 : index
      %133 = vector.load %arg8[%c0_36, %c0_37, %c0_38] : memref<1x8x256xf32, #tpu.memory_space<vmem>>, vector<1x8x256xf32>
      %134 = vector.shape_cast %133 : vector<1x8x256xf32> to vector<8x256xf32>
      %135 = vector.shape_cast %132 : vector<8x256xf32> to vector<1x8x256xf32>
      tpu.vector_store %arg8[%c0_36, %c0_37, %c0_38], %135 {strides = array<i32>} : memref<1x8x256xf32, #tpu.memory_space<vmem>>, vector<1x8x256xf32>,
      %136 = tpu.concatenate %31, %34, %37, %40 in 0 : vector<1x256xf32>, vector<1x256xf32>, vector<1x256xf32>, vector<1x256xf32> -> vector<4x256xf32>
      %c0_39 = arith.constant 0 : index
      %c0_40 = arith.constant 0 : index
      %c0_41 = arith.constant 0 : index
      %137 = vector.load %arg9[%c0_39, %c0_40, %c0_41] : memref<1x4x256xf32, #tpu.memory_space<vmem>>, vector<1x4x256xf32>
      %138 = vector.shape_cast %137 : vector<1x4x256xf32> to vector<4x256xf32>
      %139 = vector.shape_cast %136 : vector<4x256xf32> to vector<1x4x256xf32>
      tpu.vector_store %arg9[%c0_39, %c0_40, %c0_41], %139 {strides = array<i32>} : memref<1x4x256xf32, #tpu.memory_space<vmem>>, vector<1x4x256xf32>,
    } else {
    }
    %c0_12 = arith.constant 0 : index
    %c0_13 = arith.constant 0 : index
    %c0_14 = arith.constant 0 : index
    %47 = vector.load %arg3[%c0_12, %c0_13, %c0_14] : memref<1x256x4xf32, #tpu.memory_space<vmem>>, vector<1x256x4xf32>
    %48 = vector.shape_cast %47 : vector<1x256x4xf32> to vector<256x4xf32>
    %c0_15 = arith.constant 0 : index
    %c0_16 = arith.constant 0 : index
    %49 = vector.load %arg4[%c0_15, %c0_16] : memref<256x4xf32, #tpu.memory_space<vmem>>, vector<256x4xf32>
    %50 = vector.extract_strided_slice %49 {offsets = [0, 0], sizes = [256, 1], strides = [1, 1]} : vector<256x4xf32> to vector<256x1xf32>
    %51 = vector.extract_strided_slice %48 {offsets = [0, 0], sizes = [256, 1], strides = [1, 1]} : vector<256x4xf32> to vector<256x1xf32>
    %52 = vector.extract_strided_slice %49 {offsets = [0, 2], sizes = [256, 1], strides = [1, 1]} : vector<256x4xf32> to vector<256x1xf32>
    %cst_17 = arith.constant 1.000000e-01 : f32
    %53 = vector.broadcast %cst_17 : f32 to vector<256x1xf32>
    %54 = arith.mulf %53, %52 : vector<256x1xf32>
    %55 = arith.mulf %51, %54 : vector<256x1xf32>
    %56 = arith.addf %50, %55 : vector<256x1xf32>
    %57 = vector.extract_strided_slice %49 {offsets = [0, 1], sizes = [256, 1], strides = [1, 1]} : vector<256x4xf32> to vector<256x1xf32>
    %58 = vector.extract_strided_slice %48 {offsets = [0, 1], sizes = [256, 1], strides = [1, 1]} : vector<256x4xf32> to vector<256x1xf32>
    %59 = vector.extract_strided_slice %49 {offsets = [0, 3], sizes = [256, 1], strides = [1, 1]} : vector<256x4xf32> to vector<256x1xf32>
    %cst_18 = arith.constant 1.000000e-01 : f32
    %60 = vector.broadcast %cst_18 : f32 to vector<256x1xf32>
    %61 = arith.mulf %60, %59 : vector<256x1xf32>
    %62 = arith.mulf %58, %61 : vector<256x1xf32>
    %63 = arith.addf %57, %62 : vector<256x1xf32>
    %64 = vector.extract_strided_slice %49 {offsets = [0, 2], sizes = [256, 1], strides = [1, 1]} : vector<256x4xf32> to vector<256x1xf32>
    %65 = vector.extract_strided_slice %48 {offsets = [0, 2], sizes = [256, 1], strides = [1, 1]} : vector<256x4xf32> to vector<256x1xf32>
    %cst_19 = arith.constant 2.000000e-01 : f32
    %66 = vector.broadcast %cst_19 : f32 to vector<256x1xf32>
    %67 = arith.mulf %65, %66 : vector<256x1xf32>
    %68 = math.exp %67 : vector<256x1xf32>
    %69 = arith.mulf %64, %68 : vector<256x1xf32>
    %70 = vector.extract_strided_slice %49 {offsets = [0, 3], sizes = [256, 1], strides = [1, 1]} : vector<256x4xf32> to vector<256x1xf32>
    %71 = vector.extract_strided_slice %48 {offsets = [0, 3], sizes = [256, 1], strides = [1, 1]} : vector<256x4xf32> to vector<256x1xf32>
    %cst_20 = arith.constant 2.000000e-01 : f32
    %72 = vector.broadcast %cst_20 : f32 to vector<256x1xf32>
    %73 = arith.mulf %71, %72 : vector<256x1xf32>
    %74 = math.exp %73 : vector<256x1xf32>
    %75 = arith.mulf %70, %74 : vector<256x1xf32>
    %cst_21 = arith.constant 5.000000e-01 : f32
    %76 = vector.broadcast %cst_21 : f32 to vector<256x1xf32>
    %77 = arith.mulf %76, %69 : vector<256x1xf32>
    %78 = arith.subf %56, %77 : vector<256x1xf32>
    %cst_22 = arith.constant 5.000000e-01 : f32
    %79 = vector.broadcast %cst_22 : f32 to vector<256x1xf32>
    %80 = arith.mulf %79, %75 : vector<256x1xf32>
    %81 = arith.subf %63, %80 : vector<256x1xf32>
    %cst_23 = arith.constant 5.000000e-01 : f32
    %82 = vector.broadcast %cst_23 : f32 to vector<256x1xf32>
    %83 = arith.mulf %82, %69 : vector<256x1xf32>
    %84 = arith.addf %56, %83 : vector<256x1xf32>
    %cst_24 = arith.constant 5.000000e-01 : f32
    %85 = vector.broadcast %cst_24 : f32 to vector<256x1xf32>
    %86 = arith.mulf %85, %75 : vector<256x1xf32>
    %87 = arith.addf %63, %86 : vector<256x1xf32>
    %88 = arith.subf %84, %78 : vector<256x1xf32>
    %89 = arith.subf %87, %81 : vector<256x1xf32>
    %90 = arith.mulf %88, %89 : vector<256x1xf32>
    %91 = vector.broadcast %78 : vector<256x1xf32> to vector<256x256xf32>
    %92 = vector.broadcast %31 : vector<1x256xf32> to vector<256x256xf32>
    %93 = arith.maximumf %91, %92 : vector<256x256xf32>
    %94 = vector.broadcast %81 : vector<256x1xf32> to vector<256x256xf32>
    %95 = vector.broadcast %34 : vector<1x256xf32> to vector<256x256xf32>
    %96 = arith.maximumf %94, %95 : vector<256x256xf32>
    %97 = vector.broadcast %84 : vector<256x1xf32> to vector<256x256xf32>
    %98 = vector.broadcast %37 : vector<1x256xf32> to vector<256x256xf32>
    %99 = arith.minimumf %97, %98 : vector<256x256xf32>
    %100 = vector.broadcast %87 : vector<256x1xf32> to vector<256x256xf32>
    %101 = vector.broadcast %40 : vector<1x256xf32> to vector<256x256xf32>
    %102 = arith.minimumf %100, %101 : vector<256x256xf32>
    %103 = arith.subf %99, %93 : vector<256x256xf32>
    %cst_25 = arith.constant 0.000000e+00 : f32
    %104 = vector.broadcast %cst_25 : f32 to vector<256x256xf32>
    %105 = arith.maximumf %103, %104 : vector<256x256xf32>
    %106 = arith.subf %102, %96 : vector<256x256xf32>
    %cst_26 = arith.constant 0.000000e+00 : f32
    %107 = vector.broadcast %cst_26 : f32 to vector<256x256xf32>
    %108 = arith.maximumf %106, %107 : vector<256x256xf32>
    %109 = arith.mulf %105, %108 : vector<256x256xf32>
    %110 = vector.broadcast %90 : vector<256x1xf32> to vector<256x256xf32>
    %111 = vector.broadcast %43 : vector<1x256xf32> to vector<256x256xf32>
    %112 = arith.addf %110, %111 : vector<256x256xf32>
    %113 = arith.subf %112, %109 : vector<256x256xf32>
    %cst_27 = arith.constant 0.000000e+00 : f32
    %114 = vector.broadcast %cst_27 : f32 to vector<256x256xf32>
    %115 = arith.mulf %114, %113 : vector<256x256xf32>
    %116 = arith.cmpf ogt, %109, %115 : vector<256x256xf32>
    %117 = arith.extui %116 : vector<256x256xi1> to vector<256x256xi8>
    %c0_28 = arith.constant 0 : index
    %c0_29 = arith.constant 0 : index
    %c0_30 = arith.constant 0 : index
    %118 = vector.load %arg10[%c0_28, %c0_29, %c0_30] : memref<1x256x256xi8, #tpu.memory_space<vmem>>, vector<1x256x256xi8>
    %119 = vector.shape_cast %118 : vector<1x256x256xi8> to vector<256x256xi8>
    %120 = vector.shape_cast %117 : vector<256x256xi8> to vector<1x256x256xi8>
    tpu.vector_store %arg10[%c0_28, %c0_29, %c0_30], %120 {strides = array<i32>} : memref<1x256x256xi8, #tpu.memory_space<vmem>>, vector<1x256x256xi8>,
    return
  }
  func.func @transform_0(%arg0: i32, %arg1: i32, %arg2: i32) -> (i32, i32, i32) {
    %c0_i32 = arith.constant 0 : i32
    %c0_i32_0 = arith.constant 0 : i32
    return %arg0, %arg2, %c0_i32 : i32, i32, i32
  }
  func.func @transform_1(%arg0: i32, %arg1: i32, %arg2: i32) -> (i32, i32) {
    %c0_i32 = arith.constant 0 : i32
    %c0_i32_0 = arith.constant 0 : i32
    return %arg2, %c0_i32 : i32, i32
  }
  func.func @transform_2(%arg0: i32, %arg1: i32, %arg2: i32) -> (i32, i32, i32) {
    %c0_i32 = arith.constant 0 : i32
    %c0_i32_0 = arith.constant 0 : i32
    return %arg0, %c0_i32, %arg1 : i32, i32, i32
  }
  func.func @transform_3(%arg0: i32, %arg1: i32, %arg2: i32) -> (i32, i32) {
    %c0_i32 = arith.constant 0 : i32
    %c0_i32_0 = arith.constant 0 : i32
    return %c0_i32, %arg1 : i32, i32
  }
  func.func @transform_4(%arg0: i32, %arg1: i32, %arg2: i32) -> (i32, i32, i32) {
    %c0_i32 = arith.constant 0 : i32
    %c0_i32_0 = arith.constant 0 : i32
    return %arg0, %c0_i32, %arg1 : i32, i32, i32
  }
  func.func @transform_5(%arg0: i32, %arg1: i32, %arg2: i32) -> (i32, i32, i32) {
    %c0_i32 = arith.constant 0 : i32
    %c0_i32_0 = arith.constant 0 : i32
    return %arg0, %c0_i32, %arg1 : i32, i32, i32
  }
  func.func @transform_6(%arg0: i32, %arg1: i32, %arg2: i32) -> (i32, i32, i32) {
    %c0_i32 = arith.constant 0 : i32
    %c0_i32_0 = arith.constant 0 : i32
    return %arg0, %c0_i32, %arg1 : i32, i32, i32
  }
  func.func @transform_7(%arg0: i32, %arg1: i32, %arg2: i32) -> (i32, i32, i32) {
    %c0_i32 = arith.constant 0 : i32
    return %arg0, %arg2, %arg1 : i32, i32, i32
  }
}

</mosaic_0001>

<llo_original>
// kernel: tpu_custom_call.1
$region0: #{tpu_custom_call.1}
  #allocation0 [shape = 'u32[]', space=smem, size = 0x4, offset = 0x4, fixed_abs, tag = 'smem constant byte address 0x4 - core index']
  #allocation1 [shape = 'u32[144,128]{1,0:T(1,128)}', space=vmem, size = 0x12000, scoped, tag = 'internal scratch']
  %s0 = inlined_call_operand.vmem [shape: f32[2,512,4], index: 0, kind: input, shape index: {}]
  %s1 = inlined_call_operand.vmem [shape: f32[512,4], index: 1, kind: input, shape index: {}]
  %s2 = inlined_call_operand.vmem [shape: f32[2,4,512], index: 2, kind: input, shape index: {}]
  %s3 = inlined_call_operand.vmem [shape: f32[4,512], index: 3, kind: input, shape index: {}]
  %s4 = inlined_call_operand.vmem [shape: f32[2,8,512], index: 4, kind: input, shape index: {}]
  %s5 = inlined_call_operand.hbm [shape: f32[2,8,512], index: 5, kind: output, shape index: {0}]
  %s6 = inlined_call_operand.hbm [shape: f32[2,4,512], index: 6, kind: output, shape index: {1}]
  %s7 = inlined_call_operand.hbm [shape: u8[2,512,512], index: 7, kind: output, shape index: {2}]
  %8 = xla_tuple %s5, %s6, %s7
  %s9 = sld [smem:[#allocation0]]
  $region73: #{tpu_custom_call.1} parent=0
    _
  %s11 = ssub.s32 1, %s9
  %s12 = scalar_select 0, %s11, %s9
  $region1: #{tpu_custom_call.1} parent=0
    #allocation2 [shape = 'u8[16384]{0}', space=vmem, size = 0x4000, scoped, tag = 'output window, operand 0']
    #allocation3 [shape = 's32[2]{0}', space=sflag, size = 0x8, scoped, tag = 'scoped memory for tpu_custom_call.1']
    #allocation4 [shape = 'u8[8192]{0}', space=vmem, size = 0x2000, scoped, tag = 'output window, operand 1']
    #allocation5 [shape = 's32[2]{0}', space=sflag, size = 0x8, scoped, tag = 'scoped memory for tpu_custom_call.1']
    #allocation6 [shape = 'u8[131072]{0}', space=vmem, size = 0x20000, scoped, tag = 'output window, operand 2']
    %13 = vsyncpa [#allocation3], 0
    %s14 = scalar_lea.sflag [#allocation3], 1
    %15 = vsyncpa %s14, 0
    %16 = vsyncpa [#allocation5], 0
    %s17 = scalar_lea.sflag [#allocation5], 1
    %18 = vsyncpa %s17, 0
    loop: start=0, step=1, limit=10
    $region2: #{tpu_custom_call.1} parent=1 // loop_pre_header
      _
    $region3: #{tpu_custom_call.1} parent=1 // loop_header
      %s20 = sphi 0, %s24
      %p21 = scmp.ge.s32.totalorder %s20, 10
      %s27 = sphi 0, %s46
      %s28 = sphi 0, %s42
      %s29 = sphi 0, %s38
      %s30 = sphi 0, %s27
      %s31 = sphi 0, %s28
      %s32 = sphi 0, %s29
      %s33 = sphi 0, %s30
      %s34 = sphi 0, %s31
      %s35 = sphi 0, %s32
      %s51 = sphi 0, %s53
      %s54 = sphi 0, %s51
      %s55 = sphi 0, %s54
      %s71 = sphi 0, %s55
      %s77 = sphi 0, %s79
      %s80 = sphi 0, %s77
      %s81 = sphi 0, %s80
      %s97 = sphi 0, %s81
      %s105 = sphi 0, %s107
      %s108 = sphi 0, %s105
      %s109 = sphi 0, %s108
      %s125 = sphi 0, %s109
      %s131 = sphi 0, %s133
      %s134 = sphi 0, %s131
      %s135 = sphi 0, %s134
      %s151 = sphi 0, %s135
      %s159 = sphi 0, %s161
      %s162 = sphi 0, %s159
      %s163 = sphi 0, %s162
      %s179 = sphi 0, %s163
      %s187 = sphi 0, %s189
      %s190 = sphi 0, %s187
      %s191 = sphi 0, %s190
      %s207 = sphi 0, %s191
      %s215 = sphi 0, %s217
      %s218 = sphi 0, %s215
      %s219 = sphi 0, %s218
      %s235 = sphi 0, %s219
      %s245 = sphi 0, %s247
      %s248 = sphi 0, %s245
      %s249 = sphi 0, %s248
      %s265 = sphi 0, %s249
    $region4: #{tpu_custom_call.1} parent=1 // loop_header_branch
      %23 = sbr.rel (%p21) target = $region8
    $region5: #{tpu_custom_call.1} parent=1 // loop_body
      %s25 = ssub.s32 %s20, 1
      %s26 = ssub.s32 %s20, 2
      %s36 = sadd.s32 1, %s29
      %p37 = scmp.ge.s32.totalorder %s36, 2
      %s38 = scalar_select %p37, 0, %s36
      %s39 = sadd.s32 1, %s28
      %s40 = scalar_select %p37, %s39, %s28
      %p41 = scmp.ge.s32.totalorder %s40, 2
      %s42 = scalar_select %p41, 0, %s40
      %s43 = sadd.s32 1, %s27
      %s44 = scalar_select %p41, %s43, %s27
      %p45 = scmp.ge.s32.totalorder %s44, 2
      %s46 = scalar_select %p45, 0, %s44
      %s47 = ssub.s32 %s27, %s46
      %s48 = ssub.s32 %s29, %s38
      %s49 = sor.u32 %s47, %s48
      %p50 = scmp.eq.s32.totalorder %s49, 0
      %s52 = sadd.s32 %s51, 1
      %s53 = scalar_select %p50, %s51, %s52
      %p56 = pneg %p50
      %p57 = scmp.eq.s32.totalorder %s20, 7
      %p58 = por %p56, %p57
      %p59 = scmp.ne.s32.totalorder %s51, %s54
      %p60 = scmp.eq.s32.totalorder %s20, 0
      %p61 = por %p59, %p60
      %p62 = scmp.ne.s32.totalorder %s51, %s54
      %p63 = scmp.eq.s32.totalorder %s25, 7
      %p64 = por %p62, %p63
      %p65 = scmp.ne.s32.totalorder %s54, %s55
      %p66 = scmp.eq.s32.totalorder %s25, 0
      %p67 = por %p65, %p66
      %p68 = scmp.ne.s32.totalorder %s54, %s55
      %p69 = scmp.eq.s32.totalorder %s26, 7
      %p70 = por %p68, %p69
      %p72 = scmp.ne.s32.totalorder %s55, %s71
      %p73 = scmp.eq.s32.totalorder %s26, 0
      %p74 = por %p72, %p73
      %s75 = ssub.s32 %s29, %s38
      %p76 = scmp.eq.s32.totalorder %s75, 0
      %s78 = sadd.s32 %s77, 1
      %s79 = scalar_select %p76, %s77, %s78
      %p82 = pneg %p76
      %p83 = scmp.eq.s32.totalorder %s20, 7
      %p84 = por %p82, %p83
      %p85 = scmp.ne.s32.totalorder %s77, %s80
      %p86 = scmp.eq.s32.totalorder %s20, 0
      %p87 = por %p85, %p86
      %p88 = scmp.ne.s32.totalorder %s77, %s80
      %p89 = scmp.eq.s32.totalorder %s25, 7
      %p90 = por %p88, %p89
      %p91 = scmp.ne.s32.totalorder %s80, %s81
      %p92 = scmp.eq.s32.totalorder %s25, 0
      %p93 = por %p91, %p92
      %p94 = scmp.ne.s32.totalorder %s80, %s81
      %p95 = scmp.eq.s32.totalorder %s26, 7
      %p96 = por %p94, %p95
      %p98 = scmp.ne.s32.totalorder %s81, %s97
      %p99 = scmp.eq.s32.totalorder %s26, 0
      %p100 = por %p98, %p99
      %s101 = ssub.s32 %s27, %s46
      %s102 = ssub.s32 %s28, %s42
      %s103 = sor.u32 %s101, %s102
      %p104 = scmp.eq.s32.totalorder %s103, 0
      %s106 = sadd.s32 %s105, 1
      %s107 = scalar_select %p104, %s105, %s106
      %p110 = pneg %p104
      %p111 = scmp.eq.s32.totalorder %s20, 7
      %p112 = por %p110, %p111
      %p113 = scmp.ne.s32.totalorder %s105, %s108
      %p114 = scmp.eq.s32.totalorder %s20, 0
      %p115 = por %p113, %p114
      %p116 = scmp.ne.s32.totalorder %s105, %s108
      %p117 = scmp.eq.s32.totalorder %s25, 7
      %p118 = por %p116, %p117
      %p119 = scmp.ne.s32.totalorder %s108, %s109
      %p120 = scmp.eq.s32.totalorder %s25, 0
      %p121 = por %p119, %p120
      %p122 = scmp.ne.s32.totalorder %s108, %s109
      %p123 = scmp.eq.s32.totalorder %s26, 7
      %p124 = por %p122, %p123
      %p126 = scmp.ne.s32.totalorder %s109, %s125
      %p127 = scmp.eq.s32.totalorder %s26, 0
      %p128 = por %p126, %p127
      %s129 = ssub.s32 %s28, %s42
      %p130 = scmp.eq.s32.totalorder %s129, 0
      %s132 = sadd.s32 %s131, 1
      %s133 = scalar_select %p130, %s131, %s132
      %p136 = pneg %p130
      %p137 = scmp.eq.s32.totalorder %s20, 7
      %p138 = por %p136, %p137
      %p139 = scmp.ne.s32.totalorder %s131, %s134
      %p140 = scmp.eq.s32.totalorder %s20, 0
      %p141 = por %p139, %p140
      %p142 = scmp.ne.s32.totalorder %s131, %s134
      %p143 = scmp.eq.s32.totalorder %s25, 7
      %p144 = por %p142, %p143
      %p145 = scmp.ne.s32.totalorder %s134, %s135
      %p146 = scmp.eq.s32.totalorder %s25, 0
      %p147 = por %p145, %p146
      %p148 = scmp.ne.s32.totalorder %s134, %s135
      %p149 = scmp.eq.s32.totalorder %s26, 7
      %p150 = por %p148, %p149
      %p152 = scmp.ne.s32.totalorder %s135, %s151
      %p153 = scmp.eq.s32.totalorder %s26, 0
      %p154 = por %p152, %p153
      %s155 = ssub.s32 %s27, %s46
      %s156 = ssub.s32 %s28, %s42
      %s157 = sor.u32 %s155, %s156
      %p158 = scmp.eq.s32.totalorder %s157, 0
      %s160 = sadd.s32 %s159, 1
      %s161 = scalar_select %p158, %s159, %s160
      %p164 = pneg %p158
      %p165 = scmp.eq.s32.totalorder %s20, 7
      %p166 = por %p164, %p165
      %p167 = scmp.ne.s32.totalorder %s159, %s162
      %p168 = scmp.eq.s32.totalorder %s20, 0
      %p169 = por %p167, %p168
      %p170 = scmp.ne.s32.totalorder %s159, %s162
      %p171 = scmp.eq.s32.totalorder %s25, 7
      %p172 = por %p170, %p171
      %p173 = scmp.ne.s32.totalorder %s162, %s163
      %p174 = scmp.eq.s32.totalorder %s25, 0
      %p175 = por %p173, %p174
      %p176 = scmp.ne.s32.totalorder %s162, %s163
      %p177 = scmp.eq.s32.totalorder %s26, 7
      %p178 = por %p176, %p177
      %p180 = scmp.ne.s32.totalorder %s163, %s179
      %p181 = scmp.eq.s32.totalorder %s26, 0
      %p182 = por %p180, %p181
      %s183 = ssub.s32 %s27, %s46
      %s184 = ssub.s32 %s28, %s42
      %s185 = sor.u32 %s183, %s184
      %p186 = scmp.eq.s32.totalorder %s185, 0
      %s188 = sadd.s32 %s187, 1
      %s189 = scalar_select %p186, %s187, %s188
      %p192 = pneg %p186
      %p193 = scmp.eq.s32.totalorder %s20, 7
      %p194 = por %p192, %p193
      %p195 = scmp.ne.s32.totalorder %s187, %s190
      %p196 = scmp.eq.s32.totalorder %s20, 0
      %p197 = por %p195, %p196
      %p198 = scmp.ne.s32.totalorder %s187, %s190
      %p199 = scmp.eq.s32.totalorder %s25, 7
      %p200 = por %p198, %p199
      %p201 = scmp.ne.s32.totalorder %s190, %s191
      %p202 = scmp.eq.s32.totalorder %s25, 0
      %p203 = por %p201, %p202
      %p204 = scmp.ne.s32.totalorder %s190, %s191
      %p205 = scmp.eq.s32.totalorder %s26, 7
      %p206 = por %p204, %p205
      %p208 = scmp.ne.s32.totalorder %s191, %s207
      %p209 = scmp.eq.s32.totalorder %s26, 0
      %p210 = por %p208, %p209
      %s211 = ssub.s32 %s27, %s46
      %s212 = ssub.s32 %s28, %s42
      %s213 = sor.u32 %s211, %s212
      %p214 = scmp.eq.s32.totalorder %s213, 0
      %s216 = sadd.s32 %s215, 1
      %s217 = scalar_select %p214, %s215, %s216
      %p220 = pneg %p214
      %p221 = scmp.eq.s32.totalorder %s20, 7
      %p222 = por %p220, %p221
      %p223 = scmp.ne.s32.totalorder %s215, %s218
      %p224 = scmp.eq.s32.totalorder %s20, 0
      %p225 = por %p223, %p224
      %p226 = scmp.ne.s32.totalorder %s215, %s218
      %p227 = scmp.eq.s32.totalorder %s25, 7
      %p228 = por %p226, %p227
      %p229 = scmp.ne.s32.totalorder %s218, %s219
      %p230 = scmp.eq.s32.totalorder %s25, 0
      %p231 = por %p229, %p230
      %p232 = scmp.ne.s32.totalorder %s218, %s219
      %p233 = scmp.eq.s32.totalorder %s26, 7
      %p234 = por %p232, %p233
      %p236 = scmp.ne.s32.totalorder %s219, %s235
      %p237 = scmp.eq.s32.totalorder %s26, 0
      %p238 = por %p236, %p237
      %s239 = ssub.s32 %s27, %s46
      %s240 = ssub.s32 %s29, %s38
      %s241 = sor.u32 %s239, %s240
      %s242 = ssub.s32 %s28, %s42
      %s243 = sor.u32 %s241, %s242
      %p244 = scmp.eq.s32.totalorder %s243, 0
      %s246 = sadd.s32 %s245, 1
      %s247 = scalar_select %p244, %s245, %s246
      %p250 = pneg %p244
      %p251 = scmp.eq.s32.totalorder %s20, 7
      %p252 = por %p250, %p251
      %p253 = scmp.ne.s32.totalorder %s245, %s248
      %p254 = scmp.eq.s32.totalorder %s20, 0
      %p255 = por %p253, %p254
      %p256 = scmp.ne.s32.totalorder %s245, %s248
      %p257 = scmp.eq.s32.totalorder %s25, 7
      %p258 = por %p256, %p257
      %p259 = scmp.ne.s32.totalorder %s248, %s249
      %p260 = scmp.eq.s32.totalorder %s25, 0
      %p261 = por %p259, %p260
      %p262 = scmp.ne.s32.totalorder %s248, %s249
      %p263 = scmp.eq.s32.totalorder %s26, 7
      %p264 = por %p262, %p263
      %p266 = scmp.ne.s32.totalorder %s249, %s265
      %p267 = scmp.eq.s32.totalorder %s26, 0
      %p268 = por %p266, %p267
      %p269 = scmp.le.s32.totalorder 1, %s20
      %p270 = scmp.lt.s32.totalorder %s20, 9
      %p271 = pnand %p269, %p270
      %p272 = pneg %p271
      // Predicated region
      $region9: #{tpu_custom_call.1} parent=5 // pred_check
        _
      $region10: #{tpu_custom_call.1} parent=5 // pred_check_branch
        %274 = sbr.rel (%p271) target = $region12
      $region11: #{tpu_custom_call.1} parent=5 // pred_region
        %s275 = ssub.s32 %s20, 1
      $region12: #{tpu_custom_call.1} parent=5 // pred_fallthru
        _
      %p276 = scmp.lt.s32.totalorder %s20, 8
      // Predicated region
      $region13: #{tpu_custom_call.1} parent=5 // pred_check
        %p277 = pneg %p276
      $region14: #{tpu_custom_call.1} parent=5 // pred_check_branch
        %279 = sbr.rel (%p277) target = $region16
      $region15: #{tpu_custom_call.1} parent=5 // pred_region
        // Predicated region
        $region17: #{tpu_custom_call.1} parent=15 // pred_check
          %p280 = pneg %p61
        $region18: #{tpu_custom_call.1} parent=15 // pred_check_branch
          %282 = sbr.rel (%p280) target = $region20
        $region19: #{tpu_custom_call.1} parent=15 // pred_region
          %s283 = smul.u32 32, %s29
          %p284 = scmp.lt.s32.totalorder %s27, 1
          %s285 = scalar_select %p284, %s27, 1
          %p286 = scmp.lt.s32.totalorder %s283, 63
          %s287 = scalar_select %p286, %s283, 63
          %s288 = smul.addr %s285, 64
          %s289 = sadd.s32 %s287, %s288
          %s290 = smul.addr %s289, 8
          %s291 = scalar_lea.vmem %s0, %s290
          %s292 = smul.u32 32, %s29
        $region20: #{tpu_custom_call.1} parent=15 // pred_fallthru
          _
        // Predicated region
        $region21: #{tpu_custom_call.1} parent=15 // pred_check
          %p293 = pneg %p87
        $region22: #{tpu_custom_call.1} parent=15 // pred_check_branch
          %295 = sbr.rel (%p293) target = $region24
        $region23: #{tpu_custom_call.1} parent=15 // pred_region
          %s296 = smul.u32 32, %s29
          %p297 = scmp.lt.s32.totalorder %s296, 63
          %s298 = scalar_select %p297, %s296, 63
          %s299 = smul.addr %s298, 8
          %s300 = scalar_lea.vmem %s1, %s299
          %s301 = smul.u32 32, %s29
        $region24: #{tpu_custom_call.1} parent=15 // pred_fallthru
          _
        // Predicated region
        $region25: #{tpu_custom_call.1} parent=15 // pred_check
          %p302 = pneg %p115
        $region26: #{tpu_custom_call.1} parent=15 // pred_check_branch
          %304 = sbr.rel (%p302) target = $region28
        $region27: #{tpu_custom_call.1} parent=15 // pred_region
          %s305 = smul.u32 2, %s28
          %p306 = scmp.lt.s32.totalorder %s27, 1
          %s307 = scalar_select %p306, %s27, 1
          %p308 = scmp.lt.s32.totalorder %s305, 3
          %s309 = scalar_select %p308, %s305, 3
          %s310 = smul.addr %s307, 4
          %s311 = sadd.s32 %s309, %s310
          %s312 = smul.addr %s311, 4
          %s313 = scalar_lea.vmem %s2, %s312
          %s314 = smul.u32 2, %s28
        $region28: #{tpu_custom_call.1} parent=15 // pred_fallthru
          _
        // Predicated region
        $region29: #{tpu_custom_call.1} parent=15 // pred_check
          %p315 = pneg %p141
        $region30: #{tpu_custom_call.1} parent=15 // pred_check_branch
          %317 = sbr.rel (%p315) target = $region32
        $region31: #{tpu_custom_call.1} parent=15 // pred_region
          %s318 = smul.u32 2, %s28
          %p319 = scmp.lt.s32.totalorder %s318, 3
          %s320 = scalar_select %p319, %s318, 3
          %s321 = smul.addr %s320, 4
          %s322 = scalar_lea.vmem %s3, %s321
          %s323 = smul.u32 2, %s28
        $region32: #{tpu_custom_call.1} parent=15 // pred_fallthru
          _
        // Predicated region
        $region33: #{tpu_custom_call.1} parent=15 // pred_check
          %p324 = pneg %p169
        $region34: #{tpu_custom_call.1} parent=15 // pred_check_branch
          %326 = sbr.rel (%p324) target = $region36
        $region35: #{tpu_custom_call.1} parent=15 // pred_region
          %s327 = smul.u32 2, %s28
          %p328 = scmp.lt.s32.totalorder %s27, 1
          %s329 = scalar_select %p328, %s27, 1
          %p330 = scmp.lt.s32.totalorder %s327, 3
          %s331 = scalar_select %p330, %s327, 3
          %s332 = smul.addr %s329, 4
          %s333 = sadd.s32 %s331, %s332
          %s334 = smul.addr %s333, 8
          %s335 = scalar_lea.vmem %s4, %s334
          %s336 = smul.u32 2, %s28
        $region36: #{tpu_custom_call.1} parent=15 // pred_fallthru
          _
      $region16: #{tpu_custom_call.1} parent=5 // pred_fallthru
        _
      %p337 = scmp.le.s32.totalorder 1, %s20
      %p338 = scmp.lt.s32.totalorder %s20, 9
      %p339 = pnand %p337, %p338
      %p340 = pneg %p339
      // Predicated region
      $region37: #{tpu_custom_call.1} parent=5 // pred_check
        _
      $region38: #{tpu_custom_call.1} parent=5 // pred_check_branch
        %342 = sbr.rel (%p339) target = $region40
      $region39: #{tpu_custom_call.1} parent=5 // pred_region
        %s343 = ssub.s32 %s20, 1
        %s344 = smul.u32 32, %s32
        %p345 = scmp.lt.s32.totalorder %s30, 1
        %s346 = scalar_select %p345, %s30, 1
        %p347 = scmp.lt.s32.totalorder %s344, 63
        %s348 = scalar_select %p347, %s344, 63
        %s349 = smul.addr %s346, 64
        %s350 = sadd.s32 %s348, %s349
        %s351 = smul.addr %s350, 8
        %s352 = scalar_lea.vmem %s0, %s351
        %p353 = pneg %p67
        %p354 = pneg %p64
        %s355 = smul.u32 32, %s32
        %p356 = scmp.lt.s32.totalorder %s355, 63
        %s357 = scalar_select %p356, %s355, 63
        %s358 = smul.addr %s357, 8
        %s359 = scalar_lea.vmem %s1, %s358
        %p360 = pneg %p93
        %p361 = pneg %p90
        %s362 = smul.u32 2, %s31
        %p363 = scmp.lt.s32.totalorder %s30, 1
        %s364 = scalar_select %p363, %s30, 1
        %p365 = scmp.lt.s32.totalorder %s362, 3
        %s366 = scalar_select %p365, %s362, 3
        %s367 = smul.addr %s364, 4
        %s368 = sadd.s32 %s366, %s367
        %s369 = smul.addr %s368, 4
        %s370 = scalar_lea.vmem %s2, %s369
        %p371 = pneg %p121
        %p372 = pneg %p118
        %s373 = smul.u32 2, %s31
        %p374 = scmp.lt.s32.totalorder %s373, 3
        %s375 = scalar_select %p374, %s373, 3
        %s376 = smul.addr %s375, 4
        %s377 = scalar_lea.vmem %s3, %s376
        %p378 = pneg %p147
        %p379 = pneg %p144
        %s380 = smul.u32 2, %s31
        %p381 = scmp.lt.s32.totalorder %s30, 1
        %s382 = scalar_select %p381, %s30, 1
        %p383 = scmp.lt.s32.totalorder %s380, 3
        %s384 = scalar_select %p383, %s380, 3
        %s385 = smul.addr %s382, 4
        %s386 = sadd.s32 %s384, %s385
        %s387 = smul.addr %s386, 8
        %s388 = scalar_lea.vmem %s4, %s387
        %p389 = pneg %p175
        %p390 = pneg %p172
        %p391 = pneg %p203
        %p392 = pneg %p200
        %s393 = sand.u32 %s190, 1
        %s394 = scalar_lea.sflag [#allocation3], %s393
        %s395 = sand.u32 %s190, 1
        %s396 = smul.addr %s395, 16
        %s397 = scalar_lea.vmem [#allocation2], %s396
        %p398 = pneg %p231
        %p399 = pneg %p228
        %s400 = sand.u32 %s25, 1
        %s401 = scalar_lea.sflag [#allocation5], %s400
        %s402 = sand.u32 %s218, 1
        %s403 = smul.addr %s402, 8
        %s404 = scalar_lea.vmem [#allocation4], %s403
        %p405 = pneg %p261
        %p406 = pneg %p258
        %s407 = sand.u32 %s25, 1
        %s408 = scalar_lea.sflag [#allocation5], %s407
        %s409 = sand.u32 %s248, 1
        %s410 = smul.addr %s409, 128
        %s411 = scalar_lea.vmem [#allocation6], %s410
        %s412 = smul.u32 32, %s32
        %p413 = scmp.lt.s32.totalorder %s30, 1
        %s414 = scalar_select %p413, %s30, 1
        %p415 = scmp.lt.s32.totalorder %s412, 63
        %s416 = scalar_select %p415, %s412, 63
        %s417 = smul.addr %s414, 64
        %s418 = sadd.s32 %s416, %s417
        %s419 = smul.addr %s418, 8
        %s420 = scalar_lea.vmem %s0, %s419
        %s421 = smul.u32 32, %s32
        %s422 = smul.u32 32, %s32
        %p423 = scmp.lt.s32.totalorder %s422, 63
        %s424 = scalar_select %p423, %s422, 63
        %s425 = smul.addr %s424, 8
        %s426 = scalar_lea.vmem %s1, %s425
        %s427 = smul.u32 32, %s32
        %s428 = smul.u32 2, %s31
        %p429 = scmp.lt.s32.totalorder %s30, 1
        %s430 = scalar_select %p429, %s30, 1
        %p431 = scmp.lt.s32.totalorder %s428, 3
        %s432 = scalar_select %p431, %s428, 3
        %s433 = smul.addr %s430, 4
        %s434 = sadd.s32 %s432, %s433
        %s435 = smul.addr %s434, 4
        %s436 = scalar_lea.vmem %s2, %s435
        %s437 = smul.u32 2, %s31
        %s438 = smul.u32 2, %s31
        %p439 = scmp.lt.s32.totalorder %s438, 3
        %s440 = scalar_select %p439, %s438, 3
        %s441 = smul.addr %s440, 4
        %s442 = scalar_lea.vmem %s3, %s441
        %s443 = smul.u32 2, %s31
        %s444 = smul.u32 2, %s31
        %p445 = scmp.lt.s32.totalorder %s30, 1
        %s446 = scalar_select %p445, %s30, 1
        %p447 = scmp.lt.s32.totalorder %s444, 3
        %s448 = scalar_select %p447, %s444, 3
        %s449 = smul.addr %s446, 4
        %s450 = sadd.s32 %s448, %s449
        %s451 = smul.addr %s450, 8
        %s452 = scalar_lea.vmem %s4, %s451
        %s453 = smul.u32 2, %s31
        %s454 = smul.u32 2, %s31
        %s455 = smul.u32 2, %s31
        %s456 = smul.u32 8, %s32
        %s457 = smul.u32 2, %s31
        %v460 = vld [vmem:[%s436] sm:$0xff]
        %v461 = vld [vmem:[%s442] sm:$0xff]
        %v462 = vmul.f32 %v461, 0.1
        %v464 = vrot.slane %v462, 6
        %v465 = vrot.slane %v464, 4
        %v467 = vmul.f32 %v460, %v465
        %v468 = vadd.f32 %v461, %v467
        %v469 = vmul.f32 %v460, 0.2
        %v470 = vmul.f32 %v469, 1.442695
        %v471 = vpow.pop %v470
        %v472 = vmul.f32 %v461, %v471
        %v473 = vmul.f32 %v472, 0.5
        %v475 = vrot.slane %v473, 6
        %v476 = vrot.slane %v475, 4
        %v478 = vsub.f32 %v468, %v476
        %v479 = vadd.f32 %v468, %v476
        %v480 = vsub.f32 %v479, %v478
        %v482 = vrot.slane %v480, 5
        %v483 = vrot.slane %v482, 4
        %v485 = vmul.f32 %v480, %v483
        %p486 = scmp.eq.s32.totalorder %s32, 0
        // Predicated region
        $region41: #{tpu_custom_call.1} parent=39 // pred_check
          %p487 = pneg %p486
        $region42: #{tpu_custom_call.1} parent=39 // pred_check_branch
          %489 = sbr.rel (%p487) target = $region44
        $region43: #{tpu_custom_call.1} parent=39 // pred_region
          %v490 = vld [vmem:[%s452] sm:$0xff]
          %v491 = vld [vmem:[%s452 + $0x8] sm:$0xff]
          %v492 = vrot.slane %v490, 4
          %v493 = vmax.f32 %v490, %v492
          %v494 = vrot.slane %v493, 2
          %v495 = vmax.f32 %v493, %v494
          %v496 = vrot.slane %v495, 1
          %v497 = vmax.f32 %v495, %v496
          %v498 = vrot.slane %v491, 4
          %v499 = vmax.f32 %v491, %v498
          %v500 = vrot.slane %v499, 2
          %v501 = vmax.f32 %v499, %v500
          %v502 = vrot.slane %v501, 1
          %v503 = vmax.f32 %v501, %v502
          %v504 = vsub.f32 %v490, %v497
          %v505 = vsub.f32 %v491, %v503
          %v506 = vmul.f32 %v504, 1.442695
          %v507 = vpow.pop %v506
          %v508 = vmul.f32 %v505, 1.442695
          %v509 = vpow.pop %v508
          %v510 = vrot.slane %v507, 4
          %v511 = vadd.f32 %v507, %v510
          %v512 = vrot.slane %v511, 2
          %v513 = vadd.f32 %v511, %v512
          %v514 = vrot.slane %v513, 1
          %v515 = vadd.f32 %v513, %v514
          %v516 = vrot.slane %v509, 4
          %v517 = vadd.f32 %v509, %v516
          %v518 = vrot.slane %v517, 2
          %v519 = vadd.f32 %v517, %v518
          %v520 = vrot.slane %v519, 1
          %v521 = vadd.f32 %v519, %v520
          %v522 = vrcp.pop %v515
          %v523 = vrcp.pop %v521
          %v524 = vmul.f32 %v507, %v522
          %v525 = vmul.f32 %v509, %v523
          %526 = vst [vmem:[%s397] sm:$0xff] %v524
          %527 = vst [vmem:[%s397 + $0x8] sm:$0xff] %v525
          %v529 = vlaneseq
          %v530 = vshrl.u32 %v529, 7
          %v531 = vsub.s32 0, %v530
          %v532 = vrot.slane %v478, %v531
          %v533 = vlaneseq
          %v534 = vshrl.u32 %v533, 7
          %v535 = vsub.s32 4, %v534
          %v536 = vrot.slane %v478, %v535
          %v539 = vlaneseq
          %v540 = vshrl.u32 %v539, 7
          %v541 = vsub.s32 1, %v540
          %v542 = vrot.slane %v478, %v541
          %v543 = vlaneseq
          %v544 = vshrl.u32 %v543, 7
          %v545 = vsub.s32 5, %v544
          %v546 = vrot.slane %v478, %v545
          %v550 = vlaneseq
          %v551 = vshrl.u32 %v550, 7
          %v552 = vsub.s32 0, %v551
          %v553 = vrot.slane %v479, %v552
          %v554 = vlaneseq
          %v555 = vshrl.u32 %v554, 7
          %v556 = vsub.s32 4, %v555
          %v557 = vrot.slane %v479, %v556
          %v560 = vlaneseq
          %v561 = vshrl.u32 %v560, 7
          %v562 = vsub.s32 1, %v561
          %v563 = vrot.slane %v479, %v562
          %v564 = vlaneseq
          %v565 = vshrl.u32 %v564, 7
          %v566 = vsub.s32 5, %v565
          %v567 = vrot.slane %v479, %v566
          %vm570 = vcmask 1040384
          %v571 = vsel %vm570, %v532, %v542
          %v572 = vsel %vm570, %v536, %v546
          %vm573 = vcmask 1041408
          %v574 = vsel %vm573, %v571, %v553
          %v575 = vsel %vm573, %v572, %v557
          %vm576 = vcmask 1042432
          %v577 = vsel %vm576, %v574, %v563
          %v578 = vsel %vm576, %v575, %v567
          %v581 = vcombine.low %v577, %v578
          %583 = vst [vmem:[%s404] sm:$0xff] %v581
        $region44: #{tpu_custom_call.1} parent=39 // pred_fallthru
          _
        %v584 = vld [vmem:[%s420] sm:$0xff]
        %v585 = vld [vmem:[%s420 + $0x8] sm:$0xff]
        %v586 = vld [vmem:[%s420 + $0x10] sm:$0xff]
        %v587 = vld [vmem:[%s420 + $0x18] sm:$0xff]
        %v588 = vld [vmem:[%s420 + $0x20] sm:$0xff]
        %v589 = vld [vmem:[%s420 + $0x28] sm:$0xff]
        %v590 = vld [vmem:[%s420 + $0x30] sm:$0xff]
        %v591 = vld [vmem:[%s420 + $0x38] sm:$0xff]
        %v592 = vld [vmem:[%s420 + $0x40] sm:$0xff]
        %v593 = vld [vmem:[%s420 + $0x48] sm:$0xff]
        %v594 = vld [vmem:[%s420 + $0x50] sm:$0xff]
        %v595 = vld [vmem:[%s420 + $0x58] sm:$0xff]
        %v596 = vld [vmem:[%s420 + $0x60] sm:$0xff]
        %v597 = vld [vmem:[%s420 + $0x68] sm:$0xff]
        %v598 = vld [vmem:[%s420 + $0x70] sm:$0xff]
        %v599 = vld [vmem:[%s420 + $0x78] sm:$0xff]
        %v600 = vld [vmem:[%s420 + $0x80] sm:$0xff]
        %v601 = vld [vmem:[%s420 + $0x88] sm:$0xff]
        %v602 = vld [vmem:[%s420 + $0x90] sm:$0xff]
        %v603 = vld [vmem:[%s420 + $0x98] sm:$0xff]
        %v604 = vld [vmem:[%s420 + $0xa0] sm:$0xff]
        %v605 = vld [vmem:[%s420 + $0xa8] sm:$0xff]
        %v606 = vld [vmem:[%s420 + $0xb0] sm:$0xff]
        %v607 = vld [vmem:[%s420 + $0xb8] sm:$0xff]
        %v608 = vld [vmem:[%s420 + $0xc0] sm:$0xff]
        %v609 = vld [vmem:[%s420 + $0xc8] sm:$0xff]
        %v610 = vld [vmem:[%s420 + $0xd0] sm:$0xff]
        %v611 = vld [vmem:[%s420 + $0xd8] sm:$0xff]
        %v612 = vld [vmem:[%s420 + $0xe0] sm:$0xff]
        %v613 = vld [vmem:[%s420 + $0xe8] sm:$0xff]
        %v614 = vld [vmem:[%s420 + $0xf0] sm:$0xff]
        %v615 = vld [vmem:[%s420 + $0xf8] sm:$0xff]
        %v616 = vld [vmem:[%s426] sm:$0xff]
        %v617 = vld [vmem:[%s426 + $0x8] sm:$0xff]
        %v618 = vld [vmem:[%s426 + $0x10] sm:$0xff]
        %v619 = vld [vmem:[%s426 + $0x18] sm:$0xff]
        %v620 = vld [vmem:[%s426 + $0x20] sm:$0xff]
        %v621 = vld [vmem:[%s426 + $0x28] sm:$0xff]
        %v622 = vld [vmem:[%s426 + $0x30] sm:$0xff]
        %v623 = vld [vmem:[%s426 + $0x38] sm:$0xff]
        %v624 = vld [vmem:[%s426 + $0x40] sm:$0xff]
        %v625 = vld [vmem:[%s426 + $0x48] sm:$0xff]
        %v626 = vld [vmem:[%s426 + $0x50] sm:$0xff]
        %v627 = vld [vmem:[%s426 + $0x58] sm:$0xff]
        %v628 = vld [vmem:[%s426 + $0x60] sm:$0xff]
        %v629 = vld [vmem:[%s426 + $0x68] sm:$0xff]
        %v630 = vld [vmem:[%s426 + $0x70] sm:$0xff]
        %v631 = vld [vmem:[%s426 + $0x78] sm:$0xff]
        %v632 = vld [vmem:[%s426 + $0x80] sm:$0xff]
        %v633 = vld [vmem:[%s426 + $0x88] sm:$0xff]
        %v634 = vld [vmem:[%s426 + $0x90] sm:$0xff]
        %v635 = vld [vmem:[%s426 + $0x98] sm:$0xff]
        %v636 = vld [vmem:[%s426 + $0xa0] sm:$0xff]
        %v637 = vld [vmem:[%s426 + $0xa8] sm:$0xff]
        %v638 = vld [vmem:[%s426 + $0xb0] sm:$0xff]
        %v639 = vld [vmem:[%s426 + $0xb8] sm:$0xff]
        %v640 = vld [vmem:[%s426 + $0xc0] sm:$0xff]
        %v641 = vld [vmem:[%s426 + $0xc8] sm:$0xff]
        %v642 = vld [vmem:[%s426 + $0xd0] sm:$0xff]
        %v643 = vld [vmem:[%s426 + $0xd8] sm:$0xff]
        %v644 = vld [vmem:[%s426 + $0xe0] sm:$0xff]
        %v645 = vld [vmem:[%s426 + $0xe8] sm:$0xff]
        %v646 = vld [vmem:[%s426 + $0xf0] sm:$0xff]
        %v647 = vld [vmem:[%s426 + $0xf8] sm:$0xff]
        %v648 = vmul.f32 %v616, 0.1
        %v649 = vmul.f32 %v617, 0.1
        %v650 = vmul.f32 %v618, 0.1
        %v651 = vmul.f32 %v619, 0.1
        %v652 = vmul.f32 %v620, 0.1
        %v653 = vmul.f32 %v621, 0.1
        %v654 = vmul.f32 %v622, 0.1
        %v655 = vmul.f32 %v623, 0.1
        %v656 = vmul.f32 %v624, 0.1
        %v657 = vmul.f32 %v625, 0.1
        %v658 = vmul.f32 %v626, 0.1
        %v659 = vmul.f32 %v627, 0.1
        %v660 = vmul.f32 %v628, 0.1
        %v661 = vmul.f32 %v629, 0.1
        %v662 = vmul.f32 %v630, 0.1
        %v663 = vmul.f32 %v631, 0.1
        %v664 = vmul.f32 %v632, 0.1
        %v665 = vmul.f32 %v633, 0.1
        %v666 = vmul.f32 %v634, 0.1
        %v667 = vmul.f32 %v635, 0.1
        %v668 = vmul.f32 %v636, 0.1
        %v669 = vmul.f32 %v637, 0.1
        %v670 = vmul.f32 %v638, 0.1
        %v671 = vmul.f32 %v639, 0.1
        %v672 = vmul.f32 %v640, 0.1
        %v673 = vmul.f32 %v641, 0.1
        %v674 = vmul.f32 %v642, 0.1
        %v675 = vmul.f32 %v643, 0.1
        %v676 = vmul.f32 %v644, 0.1
        %v677 = vmul.f32 %v645, 0.1
        %v678 = vmul.f32 %v646, 0.1
        %v679 = vmul.f32 %v647, 0.1
        %712 = vrot.lane.b32.xlu0 %v648, 126
        %v713 = vpop.permute.xlu0 %712
        %714 = vrot.lane.b32.xlu0 %v649, 126
        %v715 = vpop.permute.xlu0 %714
        %716 = vrot.lane.b32.xlu0 %v650, 126
        %v717 = vpop.permute.xlu0 %716
        %718 = vrot.lane.b32.xlu0 %v651, 126
        %v719 = vpop.permute.xlu0 %718
        %720 = vrot.lane.b32.xlu0 %v652, 126
        %v721 = vpop.permute.xlu0 %720
        %722 = vrot.lane.b32.xlu0 %v653, 126
        %v723 = vpop.permute.xlu0 %722
        %724 = vrot.lane.b32.xlu0 %v654, 126
        %v725 = vpop.permute.xlu0 %724
        %726 = vrot.lane.b32.xlu0 %v655, 126
        %v727 = vpop.permute.xlu0 %726
        %728 = vrot.lane.b32.xlu0 %v656, 126
        %v729 = vpop.permute.xlu0 %728
        %730 = vrot.lane.b32.xlu0 %v657, 126
        %v731 = vpop.permute.xlu0 %730
        %732 = vrot.lane.b32.xlu0 %v658, 126
        %v733 = vpop.permute.xlu0 %732
        %734 = vrot.lane.b32.xlu0 %v659, 126
        %v735 = vpop.permute.xlu0 %734
        %736 = vrot.lane.b32.xlu0 %v660, 126
        %v737 = vpop.permute.xlu0 %736
        %738 = vrot.lane.b32.xlu0 %v661, 126
        %v739 = vpop.permute.xlu0 %738
        %740 = vrot.lane.b32.xlu0 %v662, 126
        %v741 = vpop.permute.xlu0 %740
        %742 = vrot.lane.b32.xlu0 %v663, 126
        %v743 = vpop.permute.xlu0 %742
        %744 = vrot.lane.b32.xlu0 %v664, 126
        %v745 = vpop.permute.xlu0 %744
        %746 = vrot.lane.b32.xlu0 %v665, 126
        %v747 = vpop.permute.xlu0 %746
        %748 = vrot.lane.b32.xlu0 %v666, 126
        %v749 = vpop.permute.xlu0 %748
        %750 = vrot.lane.b32.xlu0 %v667, 126
        %v751 = vpop.permute.xlu0 %750
        %752 = vrot.lane.b32.xlu0 %v668, 126
        %v753 = vpop.permute.xlu0 %752
        %754 = vrot.lane.b32.xlu0 %v669, 126
        %v755 = vpop.permute.xlu0 %754
        %756 = vrot.lane.b32.xlu0 %v670, 126
        %v757 = vpop.permute.xlu0 %756
        %758 = vrot.lane.b32.xlu0 %v671, 126
        %v759 = vpop.permute.xlu0 %758
        %760 = vrot.lane.b32.xlu0 %v672, 126
        %v761 = vpop.permute.xlu0 %760
        %762 = vrot.lane.b32.xlu0 %v673, 126
        %v763 = vpop.permute.xlu0 %762
        %764 = vrot.lane.b32.xlu0 %v674, 126
        %v765 = vpop.permute.xlu0 %764
        %766 = vrot.lane.b32.xlu0 %v675, 126
        %v767 = vpop.permute.xlu0 %766
        %768 = vrot.lane.b32.xlu0 %v676, 126
        %v769 = vpop.permute.xlu0 %768
        %770 = vrot.lane.b32.xlu0 %v677, 126
        %v771 = vpop.permute.xlu0 %770
        %772 = vrot.lane.b32.xlu0 %v678, 126
        %v773 = vpop.permute.xlu0 %772
        %774 = vrot.lane.b32.xlu0 %v679, 126
        %v775 = vpop.permute.xlu0 %774
        %v808 = vmul.f32 %v584, %v713
        %v809 = vmul.f32 %v585, %v715
        %v810 = vmul.f32 %v586, %v717
        %v811 = vmul.f32 %v587, %v719
        %v812 = vmul.f32 %v588, %v721
        %v813 = vmul.f32 %v589, %v723
        %v814 = vmul.f32 %v590, %v725
        %v815 = vmul.f32 %v591, %v727
        %v816 = vmul.f32 %v592, %v729
        %v817 = vmul.f32 %v593, %v731
        %v818 = vmul.f32 %v594, %v733
        %v819 = vmul.f32 %v595, %v735
        %v820 = vmul.f32 %v596, %v737
        %v821 = vmul.f32 %v597, %v739
        %v822 = vmul.f32 %v598, %v741
        %v823 = vmul.f32 %v599, %v743
        %v824 = vmul.f32 %v600, %v745
        %v825 = vmul.f32 %v601, %v747
        %v826 = vmul.f32 %v602, %v749
        %v827 = vmul.f32 %v603, %v751
        %v828 = vmul.f32 %v604, %v753
        %v829 = vmul.f32 %v605, %v755
        %v830 = vmul.f32 %v606, %v757
        %v831 = vmul.f32 %v607, %v759
        %v832 = vmul.f32 %v608, %v761
        %v833 = vmul.f32 %v609, %v763
        %v834 = vmul.f32 %v610, %v765
        %v835 = vmul.f32 %v611, %v767
        %v836 = vmul.f32 %v612, %v769
        %v837 = vmul.f32 %v613, %v771
        %v838 = vmul.f32 %v614, %v773
        %v839 = vmul.f32 %v615, %v775
        %v840 = vadd.f32 %v616, %v808
        %v841 = vadd.f32 %v617, %v809
        %v842 = vadd.f32 %v618, %v810
        %v843 = vadd.f32 %v619, %v811
        %v844 = vadd.f32 %v620, %v812
        %v845 = vadd.f32 %v621, %v813
        %v846 = vadd.f32 %v622, %v814
        %v847 = vadd.f32 %v623, %v815
        %v848 = vadd.f32 %v624, %v816
        %v849 = vadd.f32 %v625, %v817
        %v850 = vadd.f32 %v626, %v818
        %v851 = vadd.f32 %v627, %v819
        %v852 = vadd.f32 %v628, %v820
        %v853 = vadd.f32 %v629, %v821
        %v854 = vadd.f32 %v630, %v822
        %v855 = vadd.f32 %v631, %v823
        %v856 = vadd.f32 %v632, %v824
        %v857 = vadd.f32 %v633, %v825
        %v858 = vadd.f32 %v634, %v826
        %v859 = vadd.f32 %v635, %v827
        %v860 = vadd.f32 %v636, %v828
        %v861 = vadd.f32 %v637, %v829
        %v862 = vadd.f32 %v638, %v830
        %v863 = vadd.f32 %v639, %v831
        %v864 = vadd.f32 %v640, %v832
        %v865 = vadd.f32 %v641, %v833
        %v866 = vadd.f32 %v642, %v834
        %v867 = vadd.f32 %v643, %v835
        %v868 = vadd.f32 %v644, %v836
        %v869 = vadd.f32 %v645, %v837
        %v870 = vadd.f32 %v646, %v838
        %v871 = vadd.f32 %v647, %v839
        %v872 = vmul.f32 %v584, 0.2
        %v873 = vmul.f32 %v585, 0.2
        %v874 = vmul.f32 %v586, 0.2
        %v875 = vmul.f32 %v587, 0.2
        %v876 = vmul.f32 %v588, 0.2
        %v877 = vmul.f32 %v589, 0.2
        %v878 = vmul.f32 %v590, 0.2
        %v879 = vmul.f32 %v591, 0.2
        %v880 = vmul.f32 %v592, 0.2
        %v881 = vmul.f32 %v593, 0.2
        %v882 = vmul.f32 %v594, 0.2
        %v883 = vmul.f32 %v595, 0.2
        %v884 = vmul.f32 %v596, 0.2
        %v885 = vmul.f32 %v597, 0.2
        %v886 = vmul.f32 %v598, 0.2
        %v887 = vmul.f32 %v599, 0.2
        %v888 = vmul.f32 %v600, 0.2
        %v889 = vmul.f32 %v601, 0.2
        %v890 = vmul.f32 %v602, 0.2
        %v891 = vmul.f32 %v603, 0.2
        %v892 = vmul.f32 %v604, 0.2
        %v893 = vmul.f32 %v605, 0.2
        %v894 = vmul.f32 %v606, 0.2
        %v895 = vmul.f32 %v607, 0.2
        %v896 = vmul.f32 %v608, 0.2
        %v897 = vmul.f32 %v609, 0.2
        %v898 = vmul.f32 %v610, 0.2
        %v899 = vmul.f32 %v611, 0.2
        %v900 = vmul.f32 %v612, 0.2
        %v901 = vmul.f32 %v613, 0.2
        %v902 = vmul.f32 %v614, 0.2
        %v903 = vmul.f32 %v615, 0.2
        %v904 = vmul.f32 %v872, 1.442695
        %v905 = vpow.pop %v904
        %v906 = vmul.f32 %v873, 1.442695
        %v907 = vpow.pop %v906
        %v908 = vmul.f32 %v874, 1.442695
        %v909 = vpow.pop %v908
        %v910 = vmul.f32 %v875, 1.442695
        %v911 = vpow.pop %v910
        %v912 = vmul.f32 %v876, 1.442695
        %v913 = vpow.pop %v912
        %v914 = vmul.f32 %v877, 1.442695
        %v915 = vpow.pop %v914
        %v916 = vmul.f32 %v878, 1.442695
        %v917 = vpow.pop %v916
        %v918 = vmul.f32 %v879, 1.442695
        %v919 = vpow.pop %v918
        %v920 = vmul.f32 %v880, 1.442695
        %v921 = vpow.pop %v920
        %v922 = vmul.f32 %v881, 1.442695
        %v923 = vpow.pop %v922
        %v924 = vmul.f32 %v882, 1.442695
        %v925 = vpow.pop %v924
        %v926 = vmul.f32 %v883, 1.442695
        %v927 = vpow.pop %v926
        %v928 = vmul.f32 %v884, 1.442695
        %v929 = vpow.pop %v928
        %v930 = vmul.f32 %v885, 1.442695
        %v931 = vpow.pop %v930
        %v932 = vmul.f32 %v886, 1.442695
        %v933 = vpow.pop %v932
        %v934 = vmul.f32 %v887, 1.442695
        %v935 = vpow.pop %v934
        %v936 = vmul.f32 %v888, 1.442695
        %v937 = vpow.pop %v936
        %v938 = vmul.f32 %v889, 1.442695
        %v939 = vpow.pop %v938
        %v940 = vmul.f32 %v890, 1.442695
        %v941 = vpow.pop %v940
        %v942 = vmul.f32 %v891, 1.442695
        %v943 = vpow.pop %v942
        %v944 = vmul.f32 %v892, 1.442695
        %v945 = vpow.pop %v944
        %v946 = vmul.f32 %v893, 1.442695
        %v947 = vpow.pop %v946
        %v948 = vmul.f32 %v894, 1.442695
        %v949 = vpow.pop %v948
        %v950 = vmul.f32 %v895, 1.442695
        %v951 = vpow.pop %v950
        %v952 = vmul.f32 %v896, 1.442695
        %v953 = vpow.pop %v952
        %v954 = vmul.f32 %v897, 1.442695
        %v955 = vpow.pop %v954
        %v956 = vmul.f32 %v898, 1.442695
        %v957 = vpow.pop %v956
        %v958 = vmul.f32 %v899, 1.442695
        %v959 = vpow.pop %v958
        %v960 = vmul.f32 %v900, 1.442695
        %v961 = vpow.pop %v960
        %v962 = vmul.f32 %v901, 1.442695
        %v963 = vpow.pop %v962
        %v964 = vmul.f32 %v902, 1.442695
        %v965 = vpow.pop %v964
        %v966 = vmul.f32 %v903, 1.442695
        %v967 = vpow.pop %v966
        %v968 = vmul.f32 %v616, %v905
        %v969 = vmul.f32 %v617, %v907
        %v970 = vmul.f32 %v618, %v909
        %v971 = vmul.f32 %v619, %v911
        %v972 = vmul.f32 %v620, %v913
        %v973 = vmul.f32 %v621, %v915
        %v974 = vmul.f32 %v622, %v917
        %v975 = vmul.f32 %v623, %v919
        %v976 = vmul.f32 %v624, %v921
        %v977 = vmul.f32 %v625, %v923
        %v978 = vmul.f32 %v626, %v925
        %v979 = vmul.f32 %v627, %v927
        %v980 = vmul.f32 %v628, %v929
        %v981 = vmul.f32 %v629, %v931
        %v982 = vmul.f32 %v630, %v933
        %v983 = vmul.f32 %v631, %v935
        %v984 = vmul.f32 %v632, %v937
        %v985 = vmul.f32 %v633, %v939
        %v986 = vmul.f32 %v634, %v941
        %v987 = vmul.f32 %v635, %v943
        %v988 = vmul.f32 %v636, %v945
        %v989 = vmul.f32 %v637, %v947
        %v990 = vmul.f32 %v638, %v949
        %v991 = vmul.f32 %v639, %v951
        %v992 = vmul.f32 %v640, %v953
        %v993 = vmul.f32 %v641, %v955
        %v994 = vmul.f32 %v642, %v957
        %v995 = vmul.f32 %v643, %v959
        %v996 = vmul.f32 %v644, %v961
        %v997 = vmul.f32 %v645, %v963
        %v998 = vmul.f32 %v646, %v965
        %v999 = vmul.f32 %v647, %v967
        %v1000 = vmul.f32 %v968, 0.5
        %v1001 = vmul.f32 %v969, 0.5
        %v1002 = vmul.f32 %v970, 0.5
        %v1003 = vmul.f32 %v971, 0.5
        %v1004 = vmul.f32 %v972, 0.5
        %v1005 = vmul.f32 %v973, 0.5
        %v1006 = vmul.f32 %v974, 0.5
        %v1007 = vmul.f32 %v975, 0.5
        %v1008 = vmul.f32 %v976, 0.5
        %v1009 = vmul.f32 %v977, 0.5
        %v1010 = vmul.f32 %v978, 0.5
        %v1011 = vmul.f32 %v979, 0.5
        %v1012 = vmul.f32 %v980, 0.5
        %v1013 = vmul.f32 %v981, 0.5
        %v1014 = vmul.f32 %v982, 0.5
        %v1015 = vmul.f32 %v983, 0.5
        %v1016 = vmul.f32 %v984, 0.5
        %v1017 = vmul.f32 %v985, 0.5
        %v1018 = vmul.f32 %v986, 0.5
        %v1019 = vmul.f32 %v987, 0.5
        %v1020 = vmul.f32 %v988, 0.5
        %v1021 = vmul.f32 %v989, 0.5
        %v1022 = vmul.f32 %v990, 0.5
        %v1023 = vmul.f32 %v991, 0.5
        %v1024 = vmul.f32 %v992, 0.5
        %v1025 = vmul.f32 %v993, 0.5
        %v1026 = vmul.f32 %v994, 0.5
        %v1027 = vmul.f32 %v995, 0.5
        %v1028 = vmul.f32 %v996, 0.5
        %v1029 = vmul.f32 %v997, 0.5
        %v1030 = vmul.f32 %v998, 0.5
        %v1031 = vmul.f32 %v999, 0.5
        %1064 = vrot.lane.b32.xlu0 %v1000, 126
        %v1065 = vpop.permute.xlu0 %1064
        %1066 = vrot.lane.b32.xlu0 %v1001, 126
        %v1067 = vpop.permute.xlu0 %1066
        %1068 = vrot.lane.b32.xlu0 %v1002, 126
        %v1069 = vpop.permute.xlu0 %1068
        %1070 = vrot.lane.b32.xlu0 %v1003, 126
        %v1071 = vpop.permute.xlu0 %1070
        %1072 = vrot.lane.b32.xlu0 %v1004, 126
        %v1073 = vpop.permute.xlu0 %1072
        %1074 = vrot.lane.b32.xlu0 %v1005, 126
        %v1075 = vpop.permute.xlu0 %1074
        %1076 = vrot.lane.b32.xlu0 %v1006, 126
        %v1077 = vpop.permute.xlu0 %1076
        %1078 = vrot.lane.b32.xlu0 %v1007, 126
        %v1079 = vpop.permute.xlu0 %1078
        %1080 = vrot.lane.b32.xlu0 %v1008, 126
        %v1081 = vpop.permute.xlu0 %1080
        %1082 = vrot.lane.b32.xlu0 %v1009, 126
        %v1083 = vpop.permute.xlu0 %1082
        %1084 = vrot.lane.b32.xlu0 %v1010, 126
        %v1085 = vpop.permute.xlu0 %1084
        %1086 = vrot.lane.b32.xlu0 %v1011, 126
        %v1087 = vpop.permute.xlu0 %1086
        %1088 = vrot.lane.b32.xlu0 %v1012, 126
        %v1089 = vpop.permute.xlu0 %1088
        %1090 = vrot.lane.b32.xlu0 %v1013, 126
        %v1091 = vpop.permute.xlu0 %1090
        %1092 = vrot.lane.b32.xlu0 %v1014, 126
        %v1093 = vpop.permute.xlu0 %1092
        %1094 = vrot.lane.b32.xlu0 %v1015, 126
        %v1095 = vpop.permute.xlu0 %1094
        %1096 = vrot.lane.b32.xlu0 %v1016, 126
        %v1097 = vpop.permute.xlu0 %1096
        %1098 = vrot.lane.b32.xlu0 %v1017, 126
        %v1099 = vpop.permute.xlu0 %1098
        %1100 = vrot.lane.b32.xlu0 %v1018, 126
        %v1101 = vpop.permute.xlu0 %1100
        %1102 = vrot.lane.b32.xlu0 %v1019, 126
        %v1103 = vpop.permute.xlu0 %1102
        %1104 = vrot.lane.b32.xlu0 %v1020, 126
        %v1105 = vpop.permute.xlu0 %1104
        %1106 = vrot.lane.b32.xlu0 %v1021, 126
        %v1107 = vpop.permute.xlu0 %1106
        %1108 = vrot.lane.b32.xlu0 %v1022, 126
        %v1109 = vpop.permute.xlu0 %1108
        %1110 = vrot.lane.b32.xlu0 %v1023, 126
        %v1111 = vpop.permute.xlu0 %1110
        %1112 = vrot.lane.b32.xlu0 %v1024, 126
        %v1113 = vpop.permute.xlu0 %1112
        %1114 = vrot.lane.b32.xlu0 %v1025, 126
        %v1115 = vpop.permute.xlu0 %1114
        %1116 = vrot.lane.b32.xlu0 %v1026, 126
        %v1117 = vpop.permute.xlu0 %1116
        %1118 = vrot.lane.b32.xlu0 %v1027, 126
        %v1119 = vpop.permute.xlu0 %1118
        %1120 = vrot.lane.b32.xlu0 %v1028, 126
        %v1121 = vpop.permute.xlu0 %1120
        %1122 = vrot.lane.b32.xlu0 %v1029, 126
        %v1123 = vpop.permute.xlu0 %1122
        %1124 = vrot.lane.b32.xlu0 %v1030, 126
        %v1125 = vpop.permute.xlu0 %1124
        %1126 = vrot.lane.b32.xlu0 %v1031, 126
        %v1127 = vpop.permute.xlu0 %1126
        %v1160 = vsub.f32 %v840, %v1065
        %v1161 = vsub.f32 %v841, %v1067
        %v1162 = vsub.f32 %v842, %v1069
        %v1163 = vsub.f32 %v843, %v1071
        %v1164 = vsub.f32 %v844, %v1073
        %v1165 = vsub.f32 %v845, %v1075
        %v1166 = vsub.f32 %v846, %v1077
        %v1167 = vsub.f32 %v847, %v1079
        %v1168 = vsub.f32 %v848, %v1081
        %v1169 = vsub.f32 %v849, %v1083
        %v1170 = vsub.f32 %v850, %v1085
        %v1171 = vsub.f32 %v851, %v1087
        %v1172 = vsub.f32 %v852, %v1089
        %v1173 = vsub.f32 %v853, %v1091
        %v1174 = vsub.f32 %v854, %v1093
        %v1175 = vsub.f32 %v855, %v1095
        %v1176 = vsub.f32 %v856, %v1097
        %v1177 = vsub.f32 %v857, %v1099
        %v1178 = vsub.f32 %v858, %v1101
        %v1179 = vsub.f32 %v859, %v1103
        %v1180 = vsub.f32 %v860, %v1105
        %v1181 = vsub.f32 %v861, %v1107
        %v1182 = vsub.f32 %v862, %v1109
        %v1183 = vsub.f32 %v863, %v1111
        %v1184 = vsub.f32 %v864, %v1113
        %v1185 = vsub.f32 %v865, %v1115
        %v1186 = vsub.f32 %v866, %v1117
        %v1187 = vsub.f32 %v867, %v1119
        %v1188 = vsub.f32 %v868, %v1121
        %v1189 = vsub.f32 %v869, %v1123
        %v1190 = vsub.f32 %v870, %v1125
        %v1191 = vsub.f32 %v871, %v1127
        %v1192 = vadd.f32 %v840, %v1065
        %v1193 = vadd.f32 %v841, %v1067
        %v1194 = vadd.f32 %v842, %v1069
        %v1195 = vadd.f32 %v843, %v1071
        %v1196 = vadd.f32 %v844, %v1073
        %v1197 = vadd.f32 %v845, %v1075
        %v1198 = vadd.f32 %v846, %v1077
        %v1199 = vadd.f32 %v847, %v1079
        %v1200 = vadd.f32 %v848, %v1081
        %v1201 = vadd.f32 %v849, %v1083
        %v1202 = vadd.f32 %v850, %v1085
        %v1203 = vadd.f32 %v851, %v1087
        %v1204 = vadd.f32 %v852, %v1089
        %v1205 = vadd.f32 %v853, %v1091
        %v1206 = vadd.f32 %v854, %v1093
        %v1207 = vadd.f32 %v855, %v1095
        %v1208 = vadd.f32 %v856, %v1097
        %v1209 = vadd.f32 %v857, %v1099
        %v1210 = vadd.f32 %v858, %v1101
        %v1211 = vadd.f32 %v859, %v1103
        %v1212 = vadd.f32 %v860, %v1105
        %v1213 = vadd.f32 %v861, %v1107
        %v1214 = vadd.f32 %v862, %v1109
        %v1215 = vadd.f32 %v863, %v1111
        %v1216 = vadd.f32 %v864, %v1113
        %v1217 = vadd.f32 %v865, %v1115
        %v1218 = vadd.f32 %v866, %v1117
        %v1219 = vadd.f32 %v867, %v1119
        %v1220 = vadd.f32 %v868, %v1121
        %v1221 = vadd.f32 %v869, %v1123
        %v1222 = vadd.f32 %v870, %v1125
        %v1223 = vadd.f32 %v871, %v1127
        %v1224 = vsub.f32 %v1192, %v1160
        %v1225 = vsub.f32 %v1193, %v1161
        %v1226 = vsub.f32 %v1194, %v1162
        %v1227 = vsub.f32 %v1195, %v1163
        %v1228 = vsub.f32 %v1196, %v1164
        %v1229 = vsub.f32 %v1197, %v1165
        %v1230 = vsub.f32 %v1198, %v1166
        %v1231 = vsub.f32 %v1199, %v1167
        %v1232 = vsub.f32 %v1200, %v1168
        %v1233 = vsub.f32 %v1201, %v1169
        %v1234 = vsub.f32 %v1202, %v1170
        %v1235 = vsub.f32 %v1203, %v1171
        %v1236 = vsub.f32 %v1204, %v1172
        %v1237 = vsub.f32 %v1205, %v1173
        %v1238 = vsub.f32 %v1206, %v1174
        %v1239 = vsub.f32 %v1207, %v1175
        %v1240 = vsub.f32 %v1208, %v1176
        %v1241 = vsub.f32 %v1209, %v1177
        %v1242 = vsub.f32 %v1210, %v1178
        %v1243 = vsub.f32 %v1211, %v1179
        %v1244 = vsub.f32 %v1212, %v1180
        %v1245 = vsub.f32 %v1213, %v1181
        %v1246 = vsub.f32 %v1214, %v1182
        %v1247 = vsub.f32 %v1215, %v1183
        %v1248 = vsub.f32 %v1216, %v1184
        %v1249 = vsub.f32 %v1217, %v1185
        %v1250 = vsub.f32 %v1218, %v1186
        %v1251 = vsub.f32 %v1219, %v1187
        %v1252 = vsub.f32 %v1220, %v1188
        %v1253 = vsub.f32 %v1221, %v1189
        %v1254 = vsub.f32 %v1222, %v1190
        %v1255 = vsub.f32 %v1223, %v1191
        %1288 = vrot.lane.b32.xlu0 %v1224, 127
        %v1289 = vpop.permute.xlu0 %1288
        %1290 = vrot.lane.b32.xlu0 %v1225, 127
        %v1291 = vpop.permute.xlu0 %1290
        %1292 = vrot.lane.b32.xlu0 %v1226, 127
        %v1293 = vpop.permute.xlu0 %1292
        %1294 = vrot.lane.b32.xlu0 %v1227, 127
        %v1295 = vpop.permute.xlu0 %1294
        %1296 = vrot.lane.b32.xlu0 %v1228, 127
        %v1297 = vpop.permute.xlu0 %1296
        %1298 = vrot.lane.b32.xlu0 %v1229, 127
        %v1299 = vpop.permute.xlu0 %1298
        %1300 = vrot.lane.b32.xlu0 %v1230, 127
        %v1301 = vpop.permute.xlu0 %1300
        %1302 = vrot.lane.b32.xlu0 %v1231, 127
        %v1303 = vpop.permute.xlu0 %1302
        %1304 = vrot.lane.b32.xlu0 %v1232, 127
        %v1305 = vpop.permute.xlu0 %1304
        %1306 = vrot.lane.b32.xlu0 %v1233, 127
        %v1307 = vpop.permute.xlu0 %1306
        %1308 = vrot.lane.b32.xlu0 %v1234, 127
        %v1309 = vpop.permute.xlu0 %1308
        %1310 = vrot.lane.b32.xlu0 %v1235, 127
        %v1311 = vpop.permute.xlu0 %1310
        %1312 = vrot.lane.b32.xlu0 %v1236, 127
        %v1313 = vpop.permute.xlu0 %1312
        %1314 = vrot.lane.b32.xlu0 %v1237, 127
        %v1315 = vpop.permute.xlu0 %1314
        %1316 = vrot.lane.b32.xlu0 %v1238, 127
        %v1317 = vpop.permute.xlu0 %1316
        %1318 = vrot.lane.b32.xlu0 %v1239, 127
        %v1319 = vpop.permute.xlu0 %1318
        %1320 = vrot.lane.b32.xlu0 %v1240, 127
        %v1321 = vpop.permute.xlu0 %1320
        %1322 = vrot.lane.b32.xlu0 %v1241, 127
        %v1323 = vpop.permute.xlu0 %1322
        %1324 = vrot.lane.b32.xlu0 %v1242, 127
        %v1325 = vpop.permute.xlu0 %1324
        %1326 = vrot.lane.b32.xlu0 %v1243, 127
        %v1327 = vpop.permute.xlu0 %1326
        %1328 = vrot.lane.b32.xlu0 %v1244, 127
        %v1329 = vpop.permute.xlu0 %1328
        %1330 = vrot.lane.b32.xlu0 %v1245, 127
        %v1331 = vpop.permute.xlu0 %1330
        %1332 = vrot.lane.b32.xlu0 %v1246, 127
        %v1333 = vpop.permute.xlu0 %1332
        %1334 = vrot.lane.b32.xlu0 %v1247, 127
        %v1335 = vpop.permute.xlu0 %1334
        %1336 = vrot.lane.b32.xlu0 %v1248, 127
        %v1337 = vpop.permute.xlu0 %1336
        %1338 = vrot.lane.b32.xlu0 %v1249, 127
        %v1339 = vpop.permute.xlu0 %1338
        %1340 = vrot.lane.b32.xlu0 %v1250, 127
        %v1341 = vpop.permute.xlu0 %1340
        %1342 = vrot.lane.b32.xlu0 %v1251, 127
        %v1343 = vpop.permute.xlu0 %1342
        %1344 = vrot.lane.b32.xlu0 %v1252, 127
        %v1345 = vpop.permute.xlu0 %1344
        %1346 = vrot.lane.b32.xlu0 %v1253, 127
        %v1347 = vpop.permute.xlu0 %1346
        %1348 = vrot.lane.b32.xlu0 %v1254, 127
        %v1349 = vpop.permute.xlu0 %1348
        %1350 = vrot.lane.b32.xlu0 %v1255, 127
        %v1351 = vpop.permute.xlu0 %1350
        %v1384 = vmul.f32 %v1224, %v1289
        %v1385 = vmul.f32 %v1225, %v1291
        %v1386 = vmul.f32 %v1226, %v1293
        %v1387 = vmul.f32 %v1227, %v1295
        %v1388 = vmul.f32 %v1228, %v1297
        %v1389 = vmul.f32 %v1229, %v1299
        %v1390 = vmul.f32 %v1230, %v1301
        %v1391 = vmul.f32 %v1231, %v1303
        %v1392 = vmul.f32 %v1232, %v1305
        %v1393 = vmul.f32 %v1233, %v1307
        %v1394 = vmul.f32 %v1234, %v1309
        %v1395 = vmul.f32 %v1235, %v1311
        %v1396 = vmul.f32 %v1236, %v1313
        %v1397 = vmul.f32 %v1237, %v1315
        %v1398 = vmul.f32 %v1238, %v1317
        %v1399 = vmul.f32 %v1239, %v1319
        %v1400 = vmul.f32 %v1240, %v1321
        %v1401 = vmul.f32 %v1241, %v1323
        %v1402 = vmul.f32 %v1242, %v1325
        %v1403 = vmul.f32 %v1243, %v1327
        %v1404 = vmul.f32 %v1244, %v1329
        %v1405 = vmul.f32 %v1245, %v1331
        %v1406 = vmul.f32 %v1246, %v1333
        %v1407 = vmul.f32 %v1247, %v1335
        %v1408 = vmul.f32 %v1248, %v1337
        %v1409 = vmul.f32 %v1249, %v1339
        %v1410 = vmul.f32 %v1250, %v1341
        %v1411 = vmul.f32 %v1251, %v1343
        %v1412 = vmul.f32 %v1252, %v1345
        %v1413 = vmul.f32 %v1253, %v1347
        %v1414 = vmul.f32 %v1254, %v1349
        %v1415 = vmul.f32 %v1255, %v1351
        %1417 = vset.pattern.permute.xlu0 0
        %1418 = vperm.xlu0 %1417, %v1160
        %v1419 = vpop.permute.xlu0 %1418
        %1422 = vset.pattern.permute.xlu0 0
        %1423 = vperm.xlu0 %1422, %v1161
        %v1424 = vpop.permute.xlu0 %1423
        %1427 = vset.pattern.permute.xlu0 0
        %1428 = vperm.xlu0 %1427, %v1162
        %v1429 = vpop.permute.xlu0 %1428
        %1432 = vset.pattern.permute.xlu0 0
        %1433 = vperm.xlu0 %1432, %v1163
        %v1434 = vpop.permute.xlu0 %1433
        %1437 = vset.pattern.permute.xlu0 0
        %1438 = vperm.xlu0 %1437, %v1164
        %v1439 = vpop.permute.xlu0 %1438
        %1442 = vset.pattern.permute.xlu0 0
        %1443 = vperm.xlu0 %1442, %v1165
        %v1444 = vpop.permute.xlu0 %1443
        %1447 = vset.pattern.permute.xlu0 0
        %1448 = vperm.xlu0 %1447, %v1166
        %v1449 = vpop.permute.xlu0 %1448
        %1452 = vset.pattern.permute.xlu0 0
        %1453 = vperm.xlu0 %1452, %v1167
        %v1454 = vpop.permute.xlu0 %1453
        %1457 = vset.pattern.permute.xlu0 0
        %1458 = vperm.xlu0 %1457, %v1168
        %v1459 = vpop.permute.xlu0 %1458
        %1462 = vset.pattern.permute.xlu0 0
        %1463 = vperm.xlu0 %1462, %v1169
        %v1464 = vpop.permute.xlu0 %1463
        %1467 = vset.pattern.permute.xlu0 0
        %1468 = vperm.xlu0 %1467, %v1170
        %v1469 = vpop.permute.xlu0 %1468
        %1472 = vset.pattern.permute.xlu0 0
        %1473 = vperm.xlu0 %1472, %v1171
        %v1474 = vpop.permute.xlu0 %1473
        %1477 = vset.pattern.permute.xlu0 0
        %1478 = vperm.xlu0 %1477, %v1172
        %v1479 = vpop.permute.xlu0 %1478
        %1482 = vset.pattern.permute.xlu0 0
        %1483 = vperm.xlu0 %1482, %v1173
        %v1484 = vpop.permute.xlu0 %1483
        %1487 = vset.pattern.permute.xlu0 0
        %1488 = vperm.xlu0 %1487, %v1174
        %v1489 = vpop.permute.xlu0 %1488
        %1492 = vset.pattern.permute.xlu0 0
        %1493 = vperm.xlu0 %1492, %v1175
        %v1494 = vpop.permute.xlu0 %1493
        %1497 = vset.pattern.permute.xlu0 0
        %1498 = vperm.xlu0 %1497, %v1176
        %v1499 = vpop.permute.xlu0 %1498
        %1502 = vset.pattern.permute.xlu0 0
        %1503 = vperm.xlu0 %1502, %v1177
        %v1504 = vpop.permute.xlu0 %1503
        %1507 = vset.pattern.permute.xlu0 0
        %1508 = vperm.xlu0 %1507, %v1178
        %v1509 = vpop.permute.xlu0 %1508
        %1512 = vset.pattern.permute.xlu0 0
        %1513 = vperm.xlu0 %1512, %v1179
        %v1514 = vpop.permute.xlu0 %1513
        %1517 = vset.pattern.permute.xlu0 0
        %1518 = vperm.xlu0 %1517, %v1180
        %v1519 = vpop.permute.xlu0 %1518
        %1522 = vset.pattern.permute.xlu0 0
        %1523 = vperm.xlu0 %1522, %v1181
        %v1524 = vpop.permute.xlu0 %1523
        %1527 = vset.pattern.permute.xlu0 0
        %1528 = vperm.xlu0 %1527, %v1182
        %v1529 = vpop.permute.xlu0 %1528
        %1532 = vset.pattern.permute.xlu0 0
        %1533 = vperm.xlu0 %1532, %v1183
        %v1534 = vpop.permute.xlu0 %1533
        %1537 = vset.pattern.permute.xlu0 0
        %1538 = vperm.xlu0 %1537, %v1184
        %v1539 = vpop.permute.xlu0 %1538
        %1542 = vset.pattern.permute.xlu0 0
        %1543 = vperm.xlu0 %1542, %v1185
        %v1544 = vpop.permute.xlu0 %1543
        %1547 = vset.pattern.permute.xlu0 0
        %1548 = vperm.xlu0 %1547, %v1186
        %v1549 = vpop.permute.xlu0 %1548
        %1552 = vset.pattern.permute.xlu0 0
        %1553 = vperm.xlu0 %1552, %v1187
        %v1554 = vpop.permute.xlu0 %1553
        %1557 = vset.pattern.permute.xlu0 0
        %1558 = vperm.xlu0 %1557, %v1188
        %v1559 = vpop.permute.xlu0 %1558
        %1562 = vset.pattern.permute.xlu0 0
        %1563 = vperm.xlu0 %1562, %v1189
        %v1564 = vpop.permute.xlu0 %1563
        %1567 = vset.pattern.permute.xlu0 0
        %1568 = vperm.xlu0 %1567, %v1190
        %v1569 = vpop.permute.xlu0 %1568
        %1572 = vset.pattern.permute.xlu0 0
        %1573 = vperm.xlu0 %1572, %v1191
        %v1574 = vpop.permute.xlu0 %1573
        %v1577 = vlaneseq
        %v1578 = vshrl.u32 %v1577, 7
        %v1579 = vsub.s32 0, %v1578
        %v1580 = vrot.slane %v478, %v1579
        %v1581 = vlaneseq
        %v1582 = vshrl.u32 %v1581, 7
        %v1583 = vsub.s32 4, %v1582
        %v1584 = vrot.slane %v478, %v1583
        %v1587 = vlaneseq
        %v1588 = vshrl.u32 %v1587, 7
        %v1589 = vsub.s32 0, %v1588
        %v1590 = vrot.slane %v1580, %v1589
        %v1591 = vlaneseq
        %v1592 = vshrl.u32 %v1591, 7
        %v1593 = vsub.s32 0, %v1592
        %v1594 = vrot.slane %v1584, %v1593
        %v1595 = vmax.f32 %v1419, %v1590
        %v1596 = vmax.f32 %v1419, %v1594
        %v1597 = vmax.f32 %v1424, %v1590
        %v1598 = vmax.f32 %v1424, %v1594
        %v1599 = vmax.f32 %v1429, %v1590
        %v1600 = vmax.f32 %v1429, %v1594
        %v1601 = vmax.f32 %v1434, %v1590
        %v1602 = vmax.f32 %v1434, %v1594
        %v1603 = vmax.f32 %v1439, %v1590
        %v1604 = vmax.f32 %v1439, %v1594
        %v1605 = vmax.f32 %v1444, %v1590
        %v1606 = vmax.f32 %v1444, %v1594
        %v1607 = vmax.f32 %v1449, %v1590
        %v1608 = vmax.f32 %v1449, %v1594
        %v1609 = vmax.f32 %v1454, %v1590
        %v1610 = vmax.f32 %v1454, %v1594
        %v1611 = vmax.f32 %v1459, %v1590
        %v1612 = vmax.f32 %v1459, %v1594
        %v1613 = vmax.f32 %v1464, %v1590
        %v1614 = vmax.f32 %v1464, %v1594
        %v1615 = vmax.f32 %v1469, %v1590
        %v1616 = vmax.f32 %v1469, %v1594
        %v1617 = vmax.f32 %v1474, %v1590
        %v1618 = vmax.f32 %v1474, %v1594
        %v1619 = vmax.f32 %v1479, %v1590
        %v1620 = vmax.f32 %v1479, %v1594
        %v1621 = vmax.f32 %v1484, %v1590
        %v1622 = vmax.f32 %v1484, %v1594
        %v1623 = vmax.f32 %v1489, %v1590
        %v1624 = vmax.f32 %v1489, %v1594
        %v1625 = vmax.f32 %v1494, %v1590
        %v1626 = vmax.f32 %v1494, %v1594
        %v1627 = vmax.f32 %v1499, %v1590
        %v1628 = vmax.f32 %v1499, %v1594
        %v1629 = vmax.f32 %v1504, %v1590
        %v1630 = vmax.f32 %v1504, %v1594
        %v1631 = vmax.f32 %v1509, %v1590
        %v1632 = vmax.f32 %v1509, %v1594
        %v1633 = vmax.f32 %v1514, %v1590
        %v1634 = vmax.f32 %v1514, %v1594
        %v1635 = vmax.f32 %v1519, %v1590
        %v1636 = vmax.f32 %v1519, %v1594
        %v1637 = vmax.f32 %v1524, %v1590
        %v1638 = vmax.f32 %v1524, %v1594
        %v1639 = vmax.f32 %v1529, %v1590
        %v1640 = vmax.f32 %v1529, %v1594
        %v1641 = vmax.f32 %v1534, %v1590
        %v1642 = vmax.f32 %v1534, %v1594
        %v1643 = vmax.f32 %v1539, %v1590
        %v1644 = vmax.f32 %v1539, %v1594
        %v1645 = vmax.f32 %v1544, %v1590
        %v1646 = vmax.f32 %v1544, %v1594
        %v1647 = vmax.f32 %v1549, %v1590
        %v1648 = vmax.f32 %v1549, %v1594
        %v1649 = vmax.f32 %v1554, %v1590
        %v1650 = vmax.f32 %v1554, %v1594
        %v1651 = vmax.f32 %v1559, %v1590
        %v1652 = vmax.f32 %v1559, %v1594
        %v1653 = vmax.f32 %v1564, %v1590
        %v1654 = vmax.f32 %v1564, %v1594
        %v1655 = vmax.f32 %v1569, %v1590
        %v1656 = vmax.f32 %v1569, %v1594
        %v1657 = vmax.f32 %v1574, %v1590
        %v1658 = vmax.f32 %v1574, %v1594
        %1659 = vset.pattern.permute.xlu0 1
        %1660 = vperm.xlu0 %1659, %v1160
        %v1661 = vpop.permute.xlu0 %1660
        %1663 = vset.pattern.permute.xlu0 1
        %1664 = vperm.xlu0 %1663, %v1161
        %v1665 = vpop.permute.xlu0 %1664
        %1667 = vset.pattern.permute.xlu0 1
        %1668 = vperm.xlu0 %1667, %v1162
        %v1669 = vpop.permute.xlu0 %1668
        %1671 = vset.pattern.permute.xlu0 1
        %1672 = vperm.xlu0 %1671, %v1163
        %v1673 = vpop.permute.xlu0 %1672
        %1675 = vset.pattern.permute.xlu0 1
        %1676 = vperm.xlu0 %1675, %v1164
        %v1677 = vpop.permute.xlu0 %1676
        %1679 = vset.pattern.permute.xlu0 1
        %1680 = vperm.xlu0 %1679, %v1165
        %v1681 = vpop.permute.xlu0 %1680
        %1683 = vset.pattern.permute.xlu0 1
        %1684 = vperm.xlu0 %1683, %v1166
        %v1685 = vpop.permute.xlu0 %1684
        %1687 = vset.pattern.permute.xlu0 1
        %1688 = vperm.xlu0 %1687, %v1167
        %v1689 = vpop.permute.xlu0 %1688
        %1691 = vset.pattern.permute.xlu0 1
        %1692 = vperm.xlu0 %1691, %v1168
        %v1693 = vpop.permute.xlu0 %1692
        %1695 = vset.pattern.permute.xlu0 1
        %1696 = vperm.xlu0 %1695, %v1169
        %v1697 = vpop.permute.xlu0 %1696
        %1699 = vset.pattern.permute.xlu0 1
        %1700 = vperm.xlu0 %1699, %v1170
        %v1701 = vpop.permute.xlu0 %1700
        %1703 = vset.pattern.permute.xlu0 1
        %1704 = vperm.xlu0 %1703, %v1171
        %v1705 = vpop.permute.xlu0 %1704
        %1707 = vset.pattern.permute.xlu0 1
        %1708 = vperm.xlu0 %1707, %v1172
        %v1709 = vpop.permute.xlu0 %1708
        %1711 = vset.pattern.permute.xlu0 1
        %1712 = vperm.xlu0 %1711, %v1173
        %v1713 = vpop.permute.xlu0 %1712
        %1715 = vset.pattern.permute.xlu0 1
        %1716 = vperm.xlu0 %1715, %v1174
        %v1717 = vpop.permute.xlu0 %1716
        %1719 = vset.pattern.permute.xlu0 1
        %1720 = vperm.xlu0 %1719, %v1175
        %v1721 = vpop.permute.xlu0 %1720
        %1723 = vset.pattern.permute.xlu0 1
        %1724 = vperm.xlu0 %1723, %v1176
        %v1725 = vpop.permute.xlu0 %1724
        %1727 = vset.pattern.permute.xlu0 1
        %1728 = vperm.xlu0 %1727, %v1177
        %v1729 = vpop.permute.xlu0 %1728
        %1731 = vset.pattern.permute.xlu0 1
        %1732 = vperm.xlu0 %1731, %v1178
        %v1733 = vpop.permute.xlu0 %1732
        %1735 = vset.pattern.permute.xlu0 1
        %1736 = vperm.xlu0 %1735, %v1179
        %v1737 = vpop.permute.xlu0 %1736
        %1739 = vset.pattern.permute.xlu0 1
        %1740 = vperm.xlu0 %1739, %v1180
        %v1741 = vpop.permute.xlu0 %1740
        %1743 = vset.pattern.permute.xlu0 1
        %1744 = vperm.xlu0 %1743, %v1181
        %v1745 = vpop.permute.xlu0 %1744
        %1747 = vset.pattern.permute.xlu0 1
        %1748 = vperm.xlu0 %1747, %v1182
        %v1749 = vpop.permute.xlu0 %1748
        %1751 = vset.pattern.permute.xlu0 1
        %1752 = vperm.xlu0 %1751, %v1183
        %v1753 = vpop.permute.xlu0 %1752
        %1755 = vset.pattern.permute.xlu0 1
        %1756 = vperm.xlu0 %1755, %v1184
        %v1757 = vpop.permute.xlu0 %1756
        %1759 = vset.pattern.permute.xlu0 1
        %1760 = vperm.xlu0 %1759, %v1185
        %v1761 = vpop.permute.xlu0 %1760
        %1763 = vset.pattern.permute.xlu0 1
        %1764 = vperm.xlu0 %1763, %v1186
        %v1765 = vpop.permute.xlu0 %1764
        %1767 = vset.pattern.permute.xlu0 1
        %1768 = vperm.xlu0 %1767, %v1187
        %v1769 = vpop.permute.xlu0 %1768
        %1771 = vset.pattern.permute.xlu0 1
        %1772 = vperm.xlu0 %1771, %v1188
        %v1773 = vpop.permute.xlu0 %1772
        %1775 = vset.pattern.permute.xlu0 1
        %1776 = vperm.xlu0 %1775, %v1189
        %v1777 = vpop.permute.xlu0 %1776
        %1779 = vset.pattern.permute.xlu0 1
        %1780 = vperm.xlu0 %1779, %v1190
        %v1781 = vpop.permute.xlu0 %1780
        %1783 = vset.pattern.permute.xlu0 1
        %1784 = vperm.xlu0 %1783, %v1191
        %v1785 = vpop.permute.xlu0 %1784
        %v1787 = vlaneseq
        %v1788 = vshrl.u32 %v1787, 7
        %v1789 = vsub.s32 1, %v1788
        %v1790 = vrot.slane %v478, %v1789
        %v1791 = vlaneseq
        %v1792 = vshrl.u32 %v1791, 7
        %v1793 = vsub.s32 5, %v1792
        %v1794 = vrot.slane %v478, %v1793
        %v1797 = vlaneseq
        %v1798 = vshrl.u32 %v1797, 7
        %v1799 = vsub.s32 1, %v1798
        %v1800 = vrot.slane %v1790, %v1799
        %v1801 = vlaneseq
        %v1802 = vshrl.u32 %v1801, 7
        %v1803 = vsub.s32 1, %v1802
        %v1804 = vrot.slane %v1794, %v1803
        %v1805 = vmax.f32 %v1661, %v1800
        %v1806 = vmax.f32 %v1661, %v1804
        %v1807 = vmax.f32 %v1665, %v1800
        %v1808 = vmax.f32 %v1665, %v1804
        %v1809 = vmax.f32 %v1669, %v1800
        %v1810 = vmax.f32 %v1669, %v1804
        %v1811 = vmax.f32 %v1673, %v1800
        %v1812 = vmax.f32 %v1673, %v1804
        %v1813 = vmax.f32 %v1677, %v1800
        %v1814 = vmax.f32 %v1677, %v1804
        %v1815 = vmax.f32 %v1681, %v1800
        %v1816 = vmax.f32 %v1681, %v1804
        %v1817 = vmax.f32 %v1685, %v1800
        %v1818 = vmax.f32 %v1685, %v1804
        %v1819 = vmax.f32 %v1689, %v1800
        %v1820 = vmax.f32 %v1689, %v1804
        %v1821 = vmax.f32 %v1693, %v1800
        %v1822 = vmax.f32 %v1693, %v1804
        %v1823 = vmax.f32 %v1697, %v1800
        %v1824 = vmax.f32 %v1697, %v1804
        %v1825 = vmax.f32 %v1701, %v1800
        %v1826 = vmax.f32 %v1701, %v1804
        %v1827 = vmax.f32 %v1705, %v1800
        %v1828 = vmax.f32 %v1705, %v1804
        %v1829 = vmax.f32 %v1709, %v1800
        %v1830 = vmax.f32 %v1709, %v1804
        %v1831 = vmax.f32 %v1713, %v1800
        %v1832 = vmax.f32 %v1713, %v1804
        %v1833 = vmax.f32 %v1717, %v1800
        %v1834 = vmax.f32 %v1717, %v1804
        %v1835 = vmax.f32 %v1721, %v1800
        %v1836 = vmax.f32 %v1721, %v1804
        %v1837 = vmax.f32 %v1725, %v1800
        %v1838 = vmax.f32 %v1725, %v1804
        %v1839 = vmax.f32 %v1729, %v1800
        %v1840 = vmax.f32 %v1729, %v1804
        %v1841 = vmax.f32 %v1733, %v1800
        %v1842 = vmax.f32 %v1733, %v1804
        %v1843 = vmax.f32 %v1737, %v1800
        %v1844 = vmax.f32 %v1737, %v1804
        %v1845 = vmax.f32 %v1741, %v1800
        %v1846 = vmax.f32 %v1741, %v1804
        %v1847 = vmax.f32 %v1745, %v1800
        %v1848 = vmax.f32 %v1745, %v1804
        %v1849 = vmax.f32 %v1749, %v1800
        %v1850 = vmax.f32 %v1749, %v1804
        %v1851 = vmax.f32 %v1753, %v1800
        %v1852 = vmax.f32 %v1753, %v1804
        %v1853 = vmax.f32 %v1757, %v1800
        %v1854 = vmax.f32 %v1757, %v1804
        %v1855 = vmax.f32 %v1761, %v1800
        %v1856 = vmax.f32 %v1761, %v1804
        %v1857 = vmax.f32 %v1765, %v1800
        %v1858 = vmax.f32 %v1765, %v1804
        %v1859 = vmax.f32 %v1769, %v1800
        %v1860 = vmax.f32 %v1769, %v1804
        %v1861 = vmax.f32 %v1773, %v1800
        %v1862 = vmax.f32 %v1773, %v1804
        %v1863 = vmax.f32 %v1777, %v1800
        %v1864 = vmax.f32 %v1777, %v1804
        %v1865 = vmax.f32 %v1781, %v1800
        %v1866 = vmax.f32 %v1781, %v1804
        %v1867 = vmax.f32 %v1785, %v1800
        %v1868 = vmax.f32 %v1785, %v1804
        %1870 = vset.pattern.permute.xlu0 0
        %1871 = vperm.xlu0 %1870, %v1192
        %v1872 = vpop.permute.xlu0 %1871
        %1875 = vset.pattern.permute.xlu0 0
        %1876 = vperm.xlu0 %1875, %v1193
        %v1877 = vpop.permute.xlu0 %1876
        %1880 = vset.pattern.permute.xlu0 0
        %1881 = vperm.xlu0 %1880, %v1194
        %v1882 = vpop.permute.xlu0 %1881
        %1885 = vset.pattern.permute.xlu0 0
        %1886 = vperm.xlu0 %1885, %v1195
        %v1887 = vpop.permute.xlu0 %1886
        %1890 = vset.pattern.permute.xlu0 0
        %1891 = vperm.xlu0 %1890, %v1196
        %v1892 = vpop.permute.xlu0 %1891
        %1895 = vset.pattern.permute.xlu0 0
        %1896 = vperm.xlu0 %1895, %v1197
        %v1897 = vpop.permute.xlu0 %1896
        %1900 = vset.pattern.permute.xlu0 0
        %1901 = vperm.xlu0 %1900, %v1198
        %v1902 = vpop.permute.xlu0 %1901
        %1905 = vset.pattern.permute.xlu0 0
        %1906 = vperm.xlu0 %1905, %v1199
        %v1907 = vpop.permute.xlu0 %1906
        %1910 = vset.pattern.permute.xlu0 0
        %1911 = vperm.xlu0 %1910, %v1200
        %v1912 = vpop.permute.xlu0 %1911
        %1915 = vset.pattern.permute.xlu0 0
        %1916 = vperm.xlu0 %1915, %v1201
        %v1917 = vpop.permute.xlu0 %1916
        %1920 = vset.pattern.permute.xlu0 0
        %1921 = vperm.xlu0 %1920, %v1202
        %v1922 = vpop.permute.xlu0 %1921
        %1925 = vset.pattern.permute.xlu0 0
        %1926 = vperm.xlu0 %1925, %v1203
        %v1927 = vpop.permute.xlu0 %1926
        %1930 = vset.pattern.permute.xlu0 0
        %1931 = vperm.xlu0 %1930, %v1204
        %v1932 = vpop.permute.xlu0 %1931
        %1935 = vset.pattern.permute.xlu0 0
        %1936 = vperm.xlu0 %1935, %v1205
        %v1937 = vpop.permute.xlu0 %1936
        %1940 = vset.pattern.permute.xlu0 0
        %1941 = vperm.xlu0 %1940, %v1206
        %v1942 = vpop.permute.xlu0 %1941
        %1945 = vset.pattern.permute.xlu0 0
        %1946 = vperm.xlu0 %1945, %v1207
        %v1947 = vpop.permute.xlu0 %1946
        %1950 = vset.pattern.permute.xlu0 0
        %1951 = vperm.xlu0 %1950, %v1208
        %v1952 = vpop.permute.xlu0 %1951
        %1955 = vset.pattern.permute.xlu0 0
        %1956 = vperm.xlu0 %1955, %v1209
        %v1957 = vpop.permute.xlu0 %1956
        %1960 = vset.pattern.permute.xlu0 0
        %1961 = vperm.xlu0 %1960, %v1210
        %v1962 = vpop.permute.xlu0 %1961
        %1965 = vset.pattern.permute.xlu0 0
        %1966 = vperm.xlu0 %1965, %v1211
        %v1967 = vpop.permute.xlu0 %1966
        %1970 = vset.pattern.permute.xlu0 0
        %1971 = vperm.xlu0 %1970, %v1212
        %v1972 = vpop.permute.xlu0 %1971
        %1975 = vset.pattern.permute.xlu0 0
        %1976 = vperm.xlu0 %1975, %v1213
        %v1977 = vpop.permute.xlu0 %1976
        %1980 = vset.pattern.permute.xlu0 0
        %1981 = vperm.xlu0 %1980, %v1214
        %v1982 = vpop.permute.xlu0 %1981
        %1985 = vset.pattern.permute.xlu0 0
        %1986 = vperm.xlu0 %1985, %v1215
        %v1987 = vpop.permute.xlu0 %1986
        %1990 = vset.pattern.permute.xlu0 0
        %1991 = vperm.xlu0 %1990, %v1216
        %v1992 = vpop.permute.xlu0 %1991
        %1995 = vset.pattern.permute.xlu0 0
        %1996 = vperm.xlu0 %1995, %v1217
        %v1997 = vpop.permute.xlu0 %1996
        %2000 = vset.pattern.permute.xlu0 0
        %2001 = vperm.xlu0 %2000, %v1218
        %v2002 = vpop.permute.xlu0 %2001
        %2005 = vset.pattern.permute.xlu0 0
        %2006 = vperm.xlu0 %2005, %v1219
        %v2007 = vpop.permute.xlu0 %2006
        %2010 = vset.pattern.permute.xlu0 0
        %2011 = vperm.xlu0 %2010, %v1220
        %v2012 = vpop.permute.xlu0 %2011
        %2015 = vset.pattern.permute.xlu0 0
        %2016 = vperm.xlu0 %2015, %v1221
        %v2017 = vpop.permute.xlu0 %2016
        %2020 = vset.pattern.permute.xlu0 0
        %2021 = vperm.xlu0 %2020, %v1222
        %v2022 = vpop.permute.xlu0 %2021
        %2025 = vset.pattern.permute.xlu0 0
        %2026 = vperm.xlu0 %2025, %v1223
        %v2027 = vpop.permute.xlu0 %2026
        %v2030 = vlaneseq
        %v2031 = vshrl.u32 %v2030, 7
        %v2032 = vsub.s32 0, %v2031
        %v2033 = vrot.slane %v479, %v2032
        %v2034 = vlaneseq
        %v2035 = vshrl.u32 %v2034, 7
        %v2036 = vsub.s32 4, %v2035
        %v2037 = vrot.slane %v479, %v2036
        %v2040 = vlaneseq
        %v2041 = vshrl.u32 %v2040, 7
        %v2042 = vsub.s32 0, %v2041
        %v2043 = vrot.slane %v2033, %v2042
        %v2044 = vlaneseq
        %v2045 = vshrl.u32 %v2044, 7
        %v2046 = vsub.s32 0, %v2045
        %v2047 = vrot.slane %v2037, %v2046
        %v2048 = vmin.f32 %v1872, %v2043
        %v2049 = vmin.f32 %v1872, %v2047
        %v2050 = vmin.f32 %v1877, %v2043
        %v2051 = vmin.f32 %v1877, %v2047
        %v2052 = vmin.f32 %v1882, %v2043
        %v2053 = vmin.f32 %v1882, %v2047
        %v2054 = vmin.f32 %v1887, %v2043
        %v2055 = vmin.f32 %v1887, %v2047
        %v2056 = vmin.f32 %v1892, %v2043
        %v2057 = vmin.f32 %v1892, %v2047
        %v2058 = vmin.f32 %v1897, %v2043
        %v2059 = vmin.f32 %v1897, %v2047
        %v2060 = vmin.f32 %v1902, %v2043
        %v2061 = vmin.f32 %v1902, %v2047
        %v2062 = vmin.f32 %v1907, %v2043
        %v2063 = vmin.f32 %v1907, %v2047
        %v2064 = vmin.f32 %v1912, %v2043
        %v2065 = vmin.f32 %v1912, %v2047
        %v2066 = vmin.f32 %v1917, %v2043
        %v2067 = vmin.f32 %v1917, %v2047
        %v2068 = vmin.f32 %v1922, %v2043
        %v2069 = vmin.f32 %v1922, %v2047
        %v2070 = vmin.f32 %v1927, %v2043
        %v2071 = vmin.f32 %v1927, %v2047
        %v2072 = vmin.f32 %v1932, %v2043
        %v2073 = vmin.f32 %v1932, %v2047
        %v2074 = vmin.f32 %v1937, %v2043
        %v2075 = vmin.f32 %v1937, %v2047
        %v2076 = vmin.f32 %v1942, %v2043
        %v2077 = vmin.f32 %v1942, %v2047
        %v2078 = vmin.f32 %v1947, %v2043
        %v2079 = vmin.f32 %v1947, %v2047
        %v2080 = vmin.f32 %v1952, %v2043
        %v2081 = vmin.f32 %v1952, %v2047
        %v2082 = vmin.f32 %v1957, %v2043
        %v2083 = vmin.f32 %v1957, %v2047
        %v2084 = vmin.f32 %v1962, %v2043
        %v2085 = vmin.f32 %v1962, %v2047
        %v2086 = vmin.f32 %v1967, %v2043
        %v2087 = vmin.f32 %v1967, %v2047
        %v2088 = vmin.f32 %v1972, %v2043
        %v2089 = vmin.f32 %v1972, %v2047
        %v2090 = vmin.f32 %v1977, %v2043
        %v2091 = vmin.f32 %v1977, %v2047
        %v2092 = vmin.f32 %v1982, %v2043
        %v2093 = vmin.f32 %v1982, %v2047
        %v2094 = vmin.f32 %v1987, %v2043
        %v2095 = vmin.f32 %v1987, %v2047
        %v2096 = vmin.f32 %v1992, %v2043
        %v2097 = vmin.f32 %v1992, %v2047
        %v2098 = vmin.f32 %v1997, %v2043
        %v2099 = vmin.f32 %v1997, %v2047
        %v2100 = vmin.f32 %v2002, %v2043
        %v2101 = vmin.f32 %v2002, %v2047
        %v2102 = vmin.f32 %v2007, %v2043
        %v2103 = vmin.f32 %v2007, %v2047
        %v2104 = vmin.f32 %v2012, %v2043
        %v2105 = vmin.f32 %v2012, %v2047
        %v2106 = vmin.f32 %v2017, %v2043
        %v2107 = vmin.f32 %v2017, %v2047
        %v2108 = vmin.f32 %v2022, %v2043
        %v2109 = vmin.f32 %v2022, %v2047
        %v2110 = vmin.f32 %v2027, %v2043
        %v2111 = vmin.f32 %v2027, %v2047
        %2112 = vset.pattern.permute.xlu0 1
        %2113 = vperm.xlu0 %2112, %v1192
        %v2114 = vpop.permute.xlu0 %2113
        %2116 = vset.pattern.permute.xlu0 1
        %2117 = vperm.xlu0 %2116, %v1193
        %v2118 = vpop.permute.xlu0 %2117
        %2120 = vset.pattern.permute.xlu0 1
        %2121 = vperm.xlu0 %2120, %v1194
        %v2122 = vpop.permute.xlu0 %2121
        %2124 = vset.pattern.permute.xlu0 1
        %2125 = vperm.xlu0 %2124, %v1195
        %v2126 = vpop.permute.xlu0 %2125
        %2128 = vset.pattern.permute.xlu0 1
        %2129 = vperm.xlu0 %2128, %v1196
        %v2130 = vpop.permute.xlu0 %2129
        %2132 = vset.pattern.permute.xlu0 1
        %2133 = vperm.xlu0 %2132, %v1197
        %v2134 = vpop.permute.xlu0 %2133
        %2136 = vset.pattern.permute.xlu0 1
        %2137 = vperm.xlu0 %2136, %v1198
        %v2138 = vpop.permute.xlu0 %2137
        %2140 = vset.pattern.permute.xlu0 1
        %2141 = vperm.xlu0 %2140, %v1199
        %v2142 = vpop.permute.xlu0 %2141
        %2144 = vset.pattern.permute.xlu0 1
        %2145 = vperm.xlu0 %2144, %v1200
        %v2146 = vpop.permute.xlu0 %2145
        %2148 = vset.pattern.permute.xlu0 1
        %2149 = vperm.xlu0 %2148, %v1201
        %v2150 = vpop.permute.xlu0 %2149
        %2152 = vset.pattern.permute.xlu0 1
        %2153 = vperm.xlu0 %2152, %v1202
        %v2154 = vpop.permute.xlu0 %2153
        %2156 = vset.pattern.permute.xlu0 1
        %2157 = vperm.xlu0 %2156, %v1203
        %v2158 = vpop.permute.xlu0 %2157
        %2160 = vset.pattern.permute.xlu0 1
        %2161 = vperm.xlu0 %2160, %v1204
        %v2162 = vpop.permute.xlu0 %2161
        %2164 = vset.pattern.permute.xlu0 1
        %2165 = vperm.xlu0 %2164, %v1205
        %v2166 = vpop.permute.xlu0 %2165
        %2168 = vset.pattern.permute.xlu0 1
        %2169 = vperm.xlu0 %2168, %v1206
        %v2170 = vpop.permute.xlu0 %2169
        %2172 = vset.pattern.permute.xlu0 1
        %2173 = vperm.xlu0 %2172, %v1207
        %v2174 = vpop.permute.xlu0 %2173
        %2176 = vset.pattern.permute.xlu0 1
        %2177 = vperm.xlu0 %2176, %v1208
        %v2178 = vpop.permute.xlu0 %2177
        %2180 = vset.pattern.permute.xlu0 1
        %2181 = vperm.xlu0 %2180, %v1209
        %v2182 = vpop.permute.xlu0 %2181
        %2184 = vset.pattern.permute.xlu0 1
        %2185 = vperm.xlu0 %2184, %v1210
        %v2186 = vpop.permute.xlu0 %2185
        %2188 = vset.pattern.permute.xlu0 1
        %2189 = vperm.xlu0 %2188, %v1211
        %v2190 = vpop.permute.xlu0 %2189
        %2192 = vset.pattern.permute.xlu0 1
        %2193 = vperm.xlu0 %2192, %v1212
        %v2194 = vpop.permute.xlu0 %2193
        %2196 = vset.pattern.permute.xlu0 1
        %2197 = vperm.xlu0 %2196, %v1213
        %v2198 = vpop.permute.xlu0 %2197
        %2200 = vset.pattern.permute.xlu0 1
        %2201 = vperm.xlu0 %2200, %v1214
        %v2202 = vpop.permute.xlu0 %2201
        %2204 = vset.pattern.permute.xlu0 1
        %2205 = vperm.xlu0 %2204, %v1215
        %v2206 = vpop.permute.xlu0 %2205
        %2208 = vset.pattern.permute.xlu0 1
        %2209 = vperm.xlu0 %2208, %v1216
        %v2210 = vpop.permute.xlu0 %2209
        %2212 = vset.pattern.permute.xlu0 1
        %2213 = vperm.xlu0 %2212, %v1217
        %v2214 = vpop.permute.xlu0 %2213
        %2216 = vset.pattern.permute.xlu0 1
        %2217 = vperm.xlu0 %2216, %v1218
        %v2218 = vpop.permute.xlu0 %2217
        %2220 = vset.pattern.permute.xlu0 1
        %2221 = vperm.xlu0 %2220, %v1219
        %v2222 = vpop.permute.xlu0 %2221
        %2224 = vset.pattern.permute.xlu0 1
        %2225 = vperm.xlu0 %2224, %v1220
        %v2226 = vpop.permute.xlu0 %2225
        %2228 = vset.pattern.permute.xlu0 1
        %2229 = vperm.xlu0 %2228, %v1221
        %v2230 = vpop.permute.xlu0 %2229
        %2232 = vset.pattern.permute.xlu0 1
        %2233 = vperm.xlu0 %2232, %v1222
        %v2234 = vpop.permute.xlu0 %2233
        %2236 = vset.pattern.permute.xlu0 1
        %2237 = vperm.xlu0 %2236, %v1223
        %v2238 = vpop.permute.xlu0 %2237
        %v2240 = vlaneseq
        %v2241 = vshrl.u32 %v2240, 7
        %v2242 = vsub.s32 1, %v2241
        %v2243 = vrot.slane %v479, %v2242
        %v2244 = vlaneseq
        %v2245 = vshrl.u32 %v2244, 7
        %v2246 = vsub.s32 5, %v2245
        %v2247 = vrot.slane %v479, %v2246
        %v2250 = vlaneseq
        %v2251 = vshrl.u32 %v2250, 7
        %v2252 = vsub.s32 1, %v2251
        %v2253 = vrot.slane %v2243, %v2252
        %v2254 = vlaneseq
        %v2255 = vshrl.u32 %v2254, 7
        %v2256 = vsub.s32 1, %v2255
        %v2257 = vrot.slane %v2247, %v2256
        %v2258 = vmin.f32 %v2114, %v2253
        %v2259 = vmin.f32 %v2114, %v2257
        %v2260 = vmin.f32 %v2118, %v2253
        %v2261 = vmin.f32 %v2118, %v2257
        %v2262 = vmin.f32 %v2122, %v2253
        %v2263 = vmin.f32 %v2122, %v2257
        %v2264 = vmin.f32 %v2126, %v2253
        %v2265 = vmin.f32 %v2126, %v2257
        %v2266 = vmin.f32 %v2130, %v2253
        %v2267 = vmin.f32 %v2130, %v2257
        %v2268 = vmin.f32 %v2134, %v2253
        %v2269 = vmin.f32 %v2134, %v2257
        %v2270 = vmin.f32 %v2138, %v2253
        %v2271 = vmin.f32 %v2138, %v2257
        %v2272 = vmin.f32 %v2142, %v2253
        %v2273 = vmin.f32 %v2142, %v2257
        %v2274 = vmin.f32 %v2146, %v2253
        %v2275 = vmin.f32 %v2146, %v2257
        %v2276 = vmin.f32 %v2150, %v2253
        %v2277 = vmin.f32 %v2150, %v2257
        %v2278 = vmin.f32 %v2154, %v2253
        %v2279 = vmin.f32 %v2154, %v2257
        %v2280 = vmin.f32 %v2158, %v2253
        %v2281 = vmin.f32 %v2158, %v2257
        %v2282 = vmin.f32 %v2162, %v2253
        %v2283 = vmin.f32 %v2162, %v2257
        %v2284 = vmin.f32 %v2166, %v2253
        %v2285 = vmin.f32 %v2166, %v2257
        %v2286 = vmin.f32 %v2170, %v2253
        %v2287 = vmin.f32 %v2170, %v2257
        %v2288 = vmin.f32 %v2174, %v2253
        %v2289 = vmin.f32 %v2174, %v2257
        %v2290 = vmin.f32 %v2178, %v2253
        %v2291 = vmin.f32 %v2178, %v2257
        %v2292 = vmin.f32 %v2182, %v2253
        %v2293 = vmin.f32 %v2182, %v2257
        %v2294 = vmin.f32 %v2186, %v2253
        %v2295 = vmin.f32 %v2186, %v2257
        %v2296 = vmin.f32 %v2190, %v2253
        %v2297 = vmin.f32 %v2190, %v2257
        %v2298 = vmin.f32 %v2194, %v2253
        %v2299 = vmin.f32 %v2194, %v2257
        %v2300 = vmin.f32 %v2198, %v2253
        %v2301 = vmin.f32 %v2198, %v2257
        %v2302 = vmin.f32 %v2202, %v2253
        %v2303 = vmin.f32 %v2202, %v2257
        %v2304 = vmin.f32 %v2206, %v2253
        %v2305 = vmin.f32 %v2206, %v2257
        %v2306 = vmin.f32 %v2210, %v2253
        %v2307 = vmin.f32 %v2210, %v2257
        %v2308 = vmin.f32 %v2214, %v2253
        %v2309 = vmin.f32 %v2214, %v2257
        %v2310 = vmin.f32 %v2218, %v2253
        %v2311 = vmin.f32 %v2218, %v2257
        %v2312 = vmin.f32 %v2222, %v2253
        %v2313 = vmin.f32 %v2222, %v2257
        %v2314 = vmin.f32 %v2226, %v2253
        %v2315 = vmin.f32 %v2226, %v2257
        %v2316 = vmin.f32 %v2230, %v2253
        %v2317 = vmin.f32 %v2230, %v2257
        %v2318 = vmin.f32 %v2234, %v2253
        %v2319 = vmin.f32 %v2234, %v2257
        %v2320 = vmin.f32 %v2238, %v2253
        %v2321 = vmin.f32 %v2238, %v2257
        %v2322 = vsub.f32 %v2048, %v1595
        %v2323 = vsub.f32 %v2049, %v1596
        %v2324 = vsub.f32 %v2050, %v1597
        %v2325 = vsub.f32 %v2051, %v1598
        %v2326 = vsub.f32 %v2052, %v1599
        %v2327 = vsub.f32 %v2053, %v1600
        %v2328 = vsub.f32 %v2054, %v1601
        %v2329 = vsub.f32 %v2055, %v1602
        %v2330 = vsub.f32 %v2056, %v1603
        %v2331 = vsub.f32 %v2057, %v1604
        %v2332 = vsub.f32 %v2058, %v1605
        %v2333 = vsub.f32 %v2059, %v1606
        %v2334 = vsub.f32 %v2060, %v1607
        %v2335 = vsub.f32 %v2061, %v1608
        %v2336 = vsub.f32 %v2062, %v1609
        %v2337 = vsub.f32 %v2063, %v1610
        %v2338 = vsub.f32 %v2064, %v1611
        %v2339 = vsub.f32 %v2065, %v1612
        %v2340 = vsub.f32 %v2066, %v1613
        %v2341 = vsub.f32 %v2067, %v1614
        %v2342 = vsub.f32 %v2068, %v1615
        %v2343 = vsub.f32 %v2069, %v1616
        %v2344 = vsub.f32 %v2070, %v1617
        %v2345 = vsub.f32 %v2071, %v1618
        %v2346 = vsub.f32 %v2072, %v1619
        %v2347 = vsub.f32 %v2073, %v1620
        %v2348 = vsub.f32 %v2074, %v1621
        %v2349 = vsub.f32 %v2075, %v1622
        %v2350 = vsub.f32 %v2076, %v1623
        %v2351 = vsub.f32 %v2077, %v1624
        %v2352 = vsub.f32 %v2078, %v1625
        %v2353 = vsub.f32 %v2079, %v1626
        %v2354 = vsub.f32 %v2080, %v1627
        %v2355 = vsub.f32 %v2081, %v1628
        %v2356 = vsub.f32 %v2082, %v1629
        %v2357 = vsub.f32 %v2083, %v1630
        %v2358 = vsub.f32 %v2084, %v1631
        %v2359 = vsub.f32 %v2085, %v1632
        %v2360 = vsub.f32 %v2086, %v1633
        %v2361 = vsub.f32 %v2087, %v1634
        %v2362 = vsub.f32 %v2088, %v1635
        %v2363 = vsub.f32 %v2089, %v1636
        %v2364 = vsub.f32 %v2090, %v1637
        %v2365 = vsub.f32 %v2091, %v1638
        %v2366 = vsub.f32 %v2092, %v1639
        %v2367 = vsub.f32 %v2093, %v1640
        %v2368 = vsub.f32 %v2094, %v1641
        %v2369 = vsub.f32 %v2095, %v1642
        %v2370 = vsub.f32 %v2096, %v1643
        %v2371 = vsub.f32 %v2097, %v1644
        %v2372 = vsub.f32 %v2098, %v1645
        %v2373 = vsub.f32 %v2099, %v1646
        %v2374 = vsub.f32 %v2100, %v1647
        %v2375 = vsub.f32 %v2101, %v1648
        %v2376 = vsub.f32 %v2102, %v1649
        %v2377 = vsub.f32 %v2103, %v1650
        %v2378 = vsub.f32 %v2104, %v1651
        %v2379 = vsub.f32 %v2105, %v1652
        %v2380 = vsub.f32 %v2106, %v1653
        %v2381 = vsub.f32 %v2107, %v1654
        %v2382 = vsub.f32 %v2108, %v1655
        %v2383 = vsub.f32 %v2109, %v1656
        %v2384 = vsub.f32 %v2110, %v1657
        %v2385 = vsub.f32 %v2111, %v1658
        %v2386 = vmax.f32 %v2322, 0.0
        %v2387 = vmax.f32 %v2323, 0.0
        %v2388 = vmax.f32 %v2324, 0.0
        %v2389 = vmax.f32 %v2325, 0.0
        %v2390 = vmax.f32 %v2326, 0.0
        %v2391 = vmax.f32 %v2327, 0.0
        %v2392 = vmax.f32 %v2328, 0.0
        %v2393 = vmax.f32 %v2329, 0.0
        %v2394 = vmax.f32 %v2330, 0.0
        %v2395 = vmax.f32 %v2331, 0.0
        %v2396 = vmax.f32 %v2332, 0.0
        %v2397 = vmax.f32 %v2333, 0.0
        %v2398 = vmax.f32 %v2334, 0.0
        %v2399 = vmax.f32 %v2335, 0.0
        %v2400 = vmax.f32 %v2336, 0.0
        %v2401 = vmax.f32 %v2337, 0.0
        %v2402 = vmax.f32 %v2338, 0.0
        %v2403 = vmax.f32 %v2339, 0.0
        %v2404 = vmax.f32 %v2340, 0.0
        %v2405 = vmax.f32 %v2341, 0.0
        %v2406 = vmax.f32 %v2342, 0.0
        %v2407 = vmax.f32 %v2343, 0.0
        %v2408 = vmax.f32 %v2344, 0.0
        %v2409 = vmax.f32 %v2345, 0.0
        %v2410 = vmax.f32 %v2346, 0.0
        %v2411 = vmax.f32 %v2347, 0.0
        %v2412 = vmax.f32 %v2348, 0.0
        %v2413 = vmax.f32 %v2349, 0.0
        %v2414 = vmax.f32 %v2350, 0.0
        %v2415 = vmax.f32 %v2351, 0.0
        %v2416 = vmax.f32 %v2352, 0.0
        %v2417 = vmax.f32 %v2353, 0.0
        %v2418 = vmax.f32 %v2354, 0.0
        %v2419 = vmax.f32 %v2355, 0.0
        %v2420 = vmax.f32 %v2356, 0.0
        %v2421 = vmax.f32 %v2357, 0.0
        %v2422 = vmax.f32 %v2358, 0.0
        %v2423 = vmax.f32 %v2359, 0.0
        %v2424 = vmax.f32 %v2360, 0.0
        %v2425 = vmax.f32 %v2361, 0.0
        %v2426 = vmax.f32 %v2362, 0.0
        %v2427 = vmax.f32 %v2363, 0.0
        %v2428 = vmax.f32 %v2364, 0.0
        %v2429 = vmax.f32 %v2365, 0.0
        %v2430 = vmax.f32 %v2366, 0.0
        %v2431 = vmax.f32 %v2367, 0.0
        %v2432 = vmax.f32 %v2368, 0.0
        %v2433 = vmax.f32 %v2369, 0.0
        %v2434 = vmax.f32 %v2370, 0.0
        %v2435 = vmax.f32 %v2371, 0.0
        %v2436 = vmax.f32 %v2372, 0.0
        %v2437 = vmax.f32 %v2373, 0.0
        %v2438 = vmax.f32 %v2374, 0.0
        %v2439 = vmax.f32 %v2375, 0.0
        %v2440 = vmax.f32 %v2376, 0.0
        %v2441 = vmax.f32 %v2377, 0.0
        %v2442 = vmax.f32 %v2378, 0.0
        %v2443 = vmax.f32 %v2379, 0.0
        %v2444 = vmax.f32 %v2380, 0.0
        %v2445 = vmax.f32 %v2381, 0.0
        %v2446 = vmax.f32 %v2382, 0.0
        %v2447 = vmax.f32 %v2383, 0.0
        %v2448 = vmax.f32 %v2384, 0.0
        %v2449 = vmax.f32 %v2385, 0.0
        %v2450 = vsub.f32 %v2258, %v1805
        %v2451 = vsub.f32 %v2259, %v1806
        %v2452 = vsub.f32 %v2260, %v1807
        %v2453 = vsub.f32 %v2261, %v1808
        %v2454 = vsub.f32 %v2262, %v1809
        %v2455 = vsub.f32 %v2263, %v1810
        %v2456 = vsub.f32 %v2264, %v1811
        %v2457 = vsub.f32 %v2265, %v1812
        %v2458 = vsub.f32 %v2266, %v1813
        %v2459 = vsub.f32 %v2267, %v1814
        %v2460 = vsub.f32 %v2268, %v1815
        %v2461 = vsub.f32 %v2269, %v1816
        %v2462 = vsub.f32 %v2270, %v1817
        %v2463 = vsub.f32 %v2271, %v1818
        %v2464 = vsub.f32 %v2272, %v1819
        %v2465 = vsub.f32 %v2273, %v1820
        %v2466 = vsub.f32 %v2274, %v1821
        %v2467 = vsub.f32 %v2275, %v1822
        %v2468 = vsub.f32 %v2276, %v1823
        %v2469 = vsub.f32 %v2277, %v1824
        %v2470 = vsub.f32 %v2278, %v1825
        %v2471 = vsub.f32 %v2279, %v1826
        %v2472 = vsub.f32 %v2280, %v1827
        %v2473 = vsub.f32 %v2281, %v1828
        %v2474 = vsub.f32 %v2282, %v1829
        %v2475 = vsub.f32 %v2283, %v1830
        %v2476 = vsub.f32 %v2284, %v1831
        %v2477 = vsub.f32 %v2285, %v1832
        %v2478 = vsub.f32 %v2286, %v1833
        %v2479 = vsub.f32 %v2287, %v1834
        %v2480 = vsub.f32 %v2288, %v1835
        %v2481 = vsub.f32 %v2289, %v1836
        %v2482 = vsub.f32 %v2290, %v1837
        %v2483 = vsub.f32 %v2291, %v1838
        %v2484 = vsub.f32 %v2292, %v1839
        %v2485 = vsub.f32 %v2293, %v1840
        %v2486 = vsub.f32 %v2294, %v1841
        %v2487 = vsub.f32 %v2295, %v1842
        %v2488 = vsub.f32 %v2296, %v1843
        %v2489 = vsub.f32 %v2297, %v1844
        %v2490 = vsub.f32 %v2298, %v1845
        %v2491 = vsub.f32 %v2299, %v1846
        %v2492 = vsub.f32 %v2300, %v1847
        %v2493 = vsub.f32 %v2301, %v1848
        %v2494 = vsub.f32 %v2302, %v1849
        %v2495 = vsub.f32 %v2303, %v1850
        %v2496 = vsub.f32 %v2304, %v1851
        %v2497 = vsub.f32 %v2305, %v1852
        %v2498 = vsub.f32 %v2306, %v1853
        %v2499 = vsub.f32 %v2307, %v1854
        %v2500 = vsub.f32 %v2308, %v1855
        %v2501 = vsub.f32 %v2309, %v1856
        %v2502 = vsub.f32 %v2310, %v1857
        %v2503 = vsub.f32 %v2311, %v1858
        %v2504 = vsub.f32 %v2312, %v1859
        %v2505 = vsub.f32 %v2313, %v1860
        %v2506 = vsub.f32 %v2314, %v1861
        %v2507 = vsub.f32 %v2315, %v1862
        %v2508 = vsub.f32 %v2316, %v1863
        %v2509 = vsub.f32 %v2317, %v1864
        %v2510 = vsub.f32 %v2318, %v1865
        %v2511 = vsub.f32 %v2319, %v1866
        %v2512 = vsub.f32 %v2320, %v1867
        %v2513 = vsub.f32 %v2321, %v1868
        %v2514 = vmax.f32 %v2450, 0.0
        %v2515 = vmax.f32 %v2451, 0.0
        %v2516 = vmax.f32 %v2452, 0.0
        %v2517 = vmax.f32 %v2453, 0.0
        %v2518 = vmax.f32 %v2454, 0.0
        %v2519 = vmax.f32 %v2455, 0.0
        %v2520 = vmax.f32 %v2456, 0.0
        %v2521 = vmax.f32 %v2457, 0.0
        %v2522 = vmax.f32 %v2458, 0.0
        %v2523 = vmax.f32 %v2459, 0.0
        %v2524 = vmax.f32 %v2460, 0.0
        %v2525 = vmax.f32 %v2461, 0.0
        %v2526 = vmax.f32 %v2462, 0.0
        %v2527 = vmax.f32 %v2463, 0.0
        %v2528 = vmax.f32 %v2464, 0.0
        %v2529 = vmax.f32 %v2465, 0.0
        %v2530 = vmax.f32 %v2466, 0.0
        %v2531 = vmax.f32 %v2467, 0.0
        %v2532 = vmax.f32 %v2468, 0.0
        %v2533 = vmax.f32 %v2469, 0.0
        %v2534 = vmax.f32 %v2470, 0.0
        %v2535 = vmax.f32 %v2471, 0.0
        %v2536 = vmax.f32 %v2472, 0.0
        %v2537 = vmax.f32 %v2473, 0.0
        %v2538 = vmax.f32 %v2474, 0.0
        %v2539 = vmax.f32 %v2475, 0.0
        %v2540 = vmax.f32 %v2476, 0.0
        %v2541 = vmax.f32 %v2477, 0.0
        %v2542 = vmax.f32 %v2478, 0.0
        %v2543 = vmax.f32 %v2479, 0.0
        %v2544 = vmax.f32 %v2480, 0.0
        %v2545 = vmax.f32 %v2481, 0.0
        %v2546 = vmax.f32 %v2482, 0.0
        %v2547 = vmax.f32 %v2483, 0.0
        %v2548 = vmax.f32 %v2484, 0.0
        %v2549 = vmax.f32 %v2485, 0.0
        %v2550 = vmax.f32 %v2486, 0.0
        %v2551 = vmax.f32 %v2487, 0.0
        %v2552 = vmax.f32 %v2488, 0.0
        %v2553 = vmax.f32 %v2489, 0.0
        %v2554 = vmax.f32 %v2490, 0.0
        %v2555 = vmax.f32 %v2491, 0.0
        %v2556 = vmax.f32 %v2492, 0.0
        %v2557 = vmax.f32 %v2493, 0.0
        %v2558 = vmax.f32 %v2494, 0.0
        %v2559 = vmax.f32 %v2495, 0.0
        %v2560 = vmax.f32 %v2496, 0.0
        %v2561 = vmax.f32 %v2497, 0.0
        %v2562 = vmax.f32 %v2498, 0.0
        %v2563 = vmax.f32 %v2499, 0.0
        %v2564 = vmax.f32 %v2500, 0.0
        %v2565 = vmax.f32 %v2501, 0.0
        %v2566 = vmax.f32 %v2502, 0.0
        %v2567 = vmax.f32 %v2503, 0.0
        %v2568 = vmax.f32 %v2504, 0.0
        %v2569 = vmax.f32 %v2505, 0.0
        %v2570 = vmax.f32 %v2506, 0.0
        %v2571 = vmax.f32 %v2507, 0.0
        %v2572 = vmax.f32 %v2508, 0.0
        %v2573 = vmax.f32 %v2509, 0.0
        %v2574 = vmax.f32 %v2510, 0.0
        %v2575 = vmax.f32 %v2511, 0.0
        %v2576 = vmax.f32 %v2512, 0.0
        %v2577 = vmax.f32 %v2513, 0.0
        %v2578 = vmul.f32 %v2386, %v2514
        %v2579 = vmul.f32 %v2387, %v2515
        %v2580 = vmul.f32 %v2388, %v2516
        %v2581 = vmul.f32 %v2389, %v2517
        %v2582 = vmul.f32 %v2390, %v2518
        %v2583 = vmul.f32 %v2391, %v2519
        %v2584 = vmul.f32 %v2392, %v2520
        %v2585 = vmul.f32 %v2393, %v2521
        %v2586 = vmul.f32 %v2394, %v2522
        %v2587 = vmul.f32 %v2395, %v2523
        %v2588 = vmul.f32 %v2396, %v2524
        %v2589 = vmul.f32 %v2397, %v2525
        %v2590 = vmul.f32 %v2398, %v2526
        %v2591 = vmul.f32 %v2399, %v2527
        %v2592 = vmul.f32 %v2400, %v2528
        %v2593 = vmul.f32 %v2401, %v2529
        %v2594 = vmul.f32 %v2402, %v2530
        %v2595 = vmul.f32 %v2403, %v2531
        %v2596 = vmul.f32 %v2404, %v2532
        %v2597 = vmul.f32 %v2405, %v2533
        %v2598 = vmul.f32 %v2406, %v2534
        %v2599 = vmul.f32 %v2407, %v2535
        %v2600 = vmul.f32 %v2408, %v2536
        %v2601 = vmul.f32 %v2409, %v2537
        %v2602 = vmul.f32 %v2410, %v2538
        %v2603 = vmul.f32 %v2411, %v2539
        %v2604 = vmul.f32 %v2412, %v2540
        %v2605 = vmul.f32 %v2413, %v2541
        %v2606 = vmul.f32 %v2414, %v2542
        %v2607 = vmul.f32 %v2415, %v2543
        %v2608 = vmul.f32 %v2416, %v2544
        %v2609 = vmul.f32 %v2417, %v2545
        %v2610 = vmul.f32 %v2418, %v2546
        %v2611 = vmul.f32 %v2419, %v2547
        %v2612 = vmul.f32 %v2420, %v2548
        %v2613 = vmul.f32 %v2421, %v2549
        %v2614 = vmul.f32 %v2422, %v2550
        %v2615 = vmul.f32 %v2423, %v2551
        %v2616 = vmul.f32 %v2424, %v2552
        %v2617 = vmul.f32 %v2425, %v2553
        %v2618 = vmul.f32 %v2426, %v2554
        %v2619 = vmul.f32 %v2427, %v2555
        %v2620 = vmul.f32 %v2428, %v2556
        %v2621 = vmul.f32 %v2429, %v2557
        %v2622 = vmul.f32 %v2430, %v2558
        %v2623 = vmul.f32 %v2431, %v2559
        %v2624 = vmul.f32 %v2432, %v2560
        %v2625 = vmul.f32 %v2433, %v2561
        %v2626 = vmul.f32 %v2434, %v2562
        %v2627 = vmul.f32 %v2435, %v2563
        %v2628 = vmul.f32 %v2436, %v2564
        %v2629 = vmul.f32 %v2437, %v2565
        %v2630 = vmul.f32 %v2438, %v2566
        %v2631 = vmul.f32 %v2439, %v2567
        %v2632 = vmul.f32 %v2440, %v2568
        %v2633 = vmul.f32 %v2441, %v2569
        %v2634 = vmul.f32 %v2442, %v2570
        %v2635 = vmul.f32 %v2443, %v2571
        %v2636 = vmul.f32 %v2444, %v2572
        %v2637 = vmul.f32 %v2445, %v2573
        %v2638 = vmul.f32 %v2446, %v2574
        %v2639 = vmul.f32 %v2447, %v2575
        %v2640 = vmul.f32 %v2448, %v2576
        %v2641 = vmul.f32 %v2449, %v2577
        %2643 = vset.pattern.permute.xlu0 0
        %2644 = vperm.xlu0 %2643, %v1384
        %v2645 = vpop.permute.xlu0 %2644
        %2648 = vset.pattern.permute.xlu0 0
        %2649 = vperm.xlu0 %2648, %v1385
        %v2650 = vpop.permute.xlu0 %2649
        %2653 = vset.pattern.permute.xlu0 0
        %2654 = vperm.xlu0 %2653, %v1386
        %v2655 = vpop.permute.xlu0 %2654
        %2658 = vset.pattern.permute.xlu0 0
        %2659 = vperm.xlu0 %2658, %v1387
        %v2660 = vpop.permute.xlu0 %2659
        %2663 = vset.pattern.permute.xlu0 0
        %2664 = vperm.xlu0 %2663, %v1388
        %v2665 = vpop.permute.xlu0 %2664
        %2668 = vset.pattern.permute.xlu0 0
        %2669 = vperm.xlu0 %2668, %v1389
        %v2670 = vpop.permute.xlu0 %2669
        %2673 = vset.pattern.permute.xlu0 0
        %2674 = vperm.xlu0 %2673, %v1390
        %v2675 = vpop.permute.xlu0 %2674
        %2678 = vset.pattern.permute.xlu0 0
        %2679 = vperm.xlu0 %2678, %v1391
        %v2680 = vpop.permute.xlu0 %2679
        %2683 = vset.pattern.permute.xlu0 0
        %2684 = vperm.xlu0 %2683, %v1392
        %v2685 = vpop.permute.xlu0 %2684
        %2688 = vset.pattern.permute.xlu0 0
        %2689 = vperm.xlu0 %2688, %v1393
        %v2690 = vpop.permute.xlu0 %2689
        %2693 = vset.pattern.permute.xlu0 0
        %2694 = vperm.xlu0 %2693, %v1394
        %v2695 = vpop.permute.xlu0 %2694
        %2698 = vset.pattern.permute.xlu0 0
        %2699 = vperm.xlu0 %2698, %v1395
        %v2700 = vpop.permute.xlu0 %2699
        %2703 = vset.pattern.permute.xlu0 0
        %2704 = vperm.xlu0 %2703, %v1396
        %v2705 = vpop.permute.xlu0 %2704
        %2708 = vset.pattern.permute.xlu0 0
        %2709 = vperm.xlu0 %2708, %v1397
        %v2710 = vpop.permute.xlu0 %2709
        %2713 = vset.pattern.permute.xlu0 0
        %2714 = vperm.xlu0 %2713, %v1398
        %v2715 = vpop.permute.xlu0 %2714
        %2718 = vset.pattern.permute.xlu0 0
        %2719 = vperm.xlu0 %2718, %v1399
        %v2720 = vpop.permute.xlu0 %2719
        %2723 = vset.pattern.permute.xlu0 0
        %2724 = vperm.xlu0 %2723, %v1400
        %v2725 = vpop.permute.xlu0 %2724
        %2728 = vset.pattern.permute.xlu0 0
        %2729 = vperm.xlu0 %2728, %v1401
        %v2730 = vpop.permute.xlu0 %2729
        %2733 = vset.pattern.permute.xlu0 0
        %2734 = vperm.xlu0 %2733, %v1402
        %v2735 = vpop.permute.xlu0 %2734
        %2738 = vset.pattern.permute.xlu0 0
        %2739 = vperm.xlu0 %2738, %v1403
        %v2740 = vpop.permute.xlu0 %2739
        %2743 = vset.pattern.permute.xlu0 0
        %2744 = vperm.xlu0 %2743, %v1404
        %v2745 = vpop.permute.xlu0 %2744
        %2748 = vset.pattern.permute.xlu0 0
        %2749 = vperm.xlu0 %2748, %v1405
        %v2750 = vpop.permute.xlu0 %2749
        %2753 = vset.pattern.permute.xlu0 0
        %2754 = vperm.xlu0 %2753, %v1406
        %v2755 = vpop.permute.xlu0 %2754
        %2758 = vset.pattern.permute.xlu0 0
        %2759 = vperm.xlu0 %2758, %v1407
        %v2760 = vpop.permute.xlu0 %2759
        %2763 = vset.pattern.permute.xlu0 0
        %2764 = vperm.xlu0 %2763, %v1408
        %v2765 = vpop.permute.xlu0 %2764
        %2768 = vset.pattern.permute.xlu0 0
        %2769 = vperm.xlu0 %2768, %v1409
        %v2770 = vpop.permute.xlu0 %2769
        %2773 = vset.pattern.permute.xlu0 0
        %2774 = vperm.xlu0 %2773, %v1410
        %v2775 = vpop.permute.xlu0 %2774
        %2778 = vset.pattern.permute.xlu0 0
        %2779 = vperm.xlu0 %2778, %v1411
        %v2780 = vpop.permute.xlu0 %2779
        %2783 = vset.pattern.permute.xlu0 0
        %2784 = vperm.xlu0 %2783, %v1412
        %v2785 = vpop.permute.xlu0 %2784
        %2788 = vset.pattern.permute.xlu0 0
        %2789 = vperm.xlu0 %2788, %v1413
        %v2790 = vpop.permute.xlu0 %2789
        %2793 = vset.pattern.permute.xlu0 0
        %2794 = vperm.xlu0 %2793, %v1414
        %v2795 = vpop.permute.xlu0 %2794
        %2798 = vset.pattern.permute.xlu0 0
        %2799 = vperm.xlu0 %2798, %v1415
        %v2800 = vpop.permute.xlu0 %2799
        %v2803 = vlaneseq
        %v2804 = vshrl.u32 %v2803, 7
        %v2805 = vsub.s32 0, %v2804
        %v2806 = vrot.slane %v485, %v2805
        %v2807 = vlaneseq
        %v2808 = vshrl.u32 %v2807, 7
        %v2809 = vsub.s32 4, %v2808
        %v2810 = vrot.slane %v485, %v2809
        %v2813 = vlaneseq
        %v2814 = vshrl.u32 %v2813, 7
        %v2815 = vsub.s32 0, %v2814
        %v2816 = vrot.slane %v2806, %v2815
        %v2817 = vlaneseq
        %v2818 = vshrl.u32 %v2817, 7
        %v2819 = vsub.s32 0, %v2818
        %v2820 = vrot.slane %v2810, %v2819
        %v2821 = vadd.f32 %v2645, %v2816
        %v2822 = vadd.f32 %v2645, %v2820
        %v2823 = vadd.f32 %v2650, %v2816
        %v2824 = vadd.f32 %v2650, %v2820
        %v2825 = vadd.f32 %v2655, %v2816
        %v2826 = vadd.f32 %v2655, %v2820
        %v2827 = vadd.f32 %v2660, %v2816
        %v2828 = vadd.f32 %v2660, %v2820
        %v2829 = vadd.f32 %v2665, %v2816
        %v2830 = vadd.f32 %v2665, %v2820
        %v2831 = vadd.f32 %v2670, %v2816
        %v2832 = vadd.f32 %v2670, %v2820
        %v2833 = vadd.f32 %v2675, %v2816
        %v2834 = vadd.f32 %v2675, %v2820
        %v2835 = vadd.f32 %v2680, %v2816
        %v2836 = vadd.f32 %v2680, %v2820
        %v2837 = vadd.f32 %v2685, %v2816
        %v2838 = vadd.f32 %v2685, %v2820
        %v2839 = vadd.f32 %v2690, %v2816
        %v2840 = vadd.f32 %v2690, %v2820
        %v2841 = vadd.f32 %v2695, %v2816
        %v2842 = vadd.f32 %v2695, %v2820
        %v2843 = vadd.f32 %v2700, %v2816
        %v2844 = vadd.f32 %v2700, %v2820
        %v2845 = vadd.f32 %v2705, %v2816
        %v2846 = vadd.f32 %v2705, %v2820
        %v2847 = vadd.f32 %v2710, %v2816
        %v2848 = vadd.f32 %v2710, %v2820
        %v2849 = vadd.f32 %v2715, %v2816
        %v2850 = vadd.f32 %v2715, %v2820
        %v2851 = vadd.f32 %v2720, %v2816
        %v2852 = vadd.f32 %v2720, %v2820
        %v2853 = vadd.f32 %v2725, %v2816
        %v2854 = vadd.f32 %v2725, %v2820
        %v2855 = vadd.f32 %v2730, %v2816
        %v2856 = vadd.f32 %v2730, %v2820
        %v2857 = vadd.f32 %v2735, %v2816
        %v2858 = vadd.f32 %v2735, %v2820
        %v2859 = vadd.f32 %v2740, %v2816
        %v2860 = vadd.f32 %v2740, %v2820
        %v2861 = vadd.f32 %v2745, %v2816
        %v2862 = vadd.f32 %v2745, %v2820
        %v2863 = vadd.f32 %v2750, %v2816
        %v2864 = vadd.f32 %v2750, %v2820
        %v2865 = vadd.f32 %v2755, %v2816
        %v2866 = vadd.f32 %v2755, %v2820
        %v2867 = vadd.f32 %v2760, %v2816
        %v2868 = vadd.f32 %v2760, %v2820
        %v2869 = vadd.f32 %v2765, %v2816
        %v2870 = vadd.f32 %v2765, %v2820
        %v2871 = vadd.f32 %v2770, %v2816
        %v2872 = vadd.f32 %v2770, %v2820
        %v2873 = vadd.f32 %v2775, %v2816
        %v2874 = vadd.f32 %v2775, %v2820
        %v2875 = vadd.f32 %v2780, %v2816
        %v2876 = vadd.f32 %v2780, %v2820
        %v2877 = vadd.f32 %v2785, %v2816
        %v2878 = vadd.f32 %v2785, %v2820
        %v2879 = vadd.f32 %v2790, %v2816
        %v2880 = vadd.f32 %v2790, %v2820
        %v2881 = vadd.f32 %v2795, %v2816
        %v2882 = vadd.f32 %v2795, %v2820
        %v2883 = vadd.f32 %v2800, %v2816
        %v2884 = vadd.f32 %v2800, %v2820
        %v2885 = vsub.f32 %v2821, %v2578
        %v2886 = vsub.f32 %v2822, %v2579
        %v2887 = vsub.f32 %v2823, %v2580
        %v2888 = vsub.f32 %v2824, %v2581
        %v2889 = vsub.f32 %v2825, %v2582
        %v2890 = vsub.f32 %v2826, %v2583
        %v2891 = vsub.f32 %v2827, %v2584
        %v2892 = vsub.f32 %v2828, %v2585
        %v2893 = vsub.f32 %v2829, %v2586
        %v2894 = vsub.f32 %v2830, %v2587
        %v2895 = vsub.f32 %v2831, %v2588
        %v2896 = vsub.f32 %v2832, %v2589
        %v2897 = vsub.f32 %v2833, %v2590
        %v2898 = vsub.f32 %v2834, %v2591
        %v2899 = vsub.f32 %v2835, %v2592
        %v2900 = vsub.f32 %v2836, %v2593
        %v2901 = vsub.f32 %v2837, %v2594
        %v2902 = vsub.f32 %v2838, %v2595
        %v2903 = vsub.f32 %v2839, %v2596
        %v2904 = vsub.f32 %v2840, %v2597
        %v2905 = vsub.f32 %v2841, %v2598
        %v2906 = vsub.f32 %v2842, %v2599
        %v2907 = vsub.f32 %v2843, %v2600
        %v2908 = vsub.f32 %v2844, %v2601
        %v2909 = vsub.f32 %v2845, %v2602
        %v2910 = vsub.f32 %v2846, %v2603
        %v2911 = vsub.f32 %v2847, %v2604
        %v2912 = vsub.f32 %v2848, %v2605
        %v2913 = vsub.f32 %v2849, %v2606
        %v2914 = vsub.f32 %v2850, %v2607
        %v2915 = vsub.f32 %v2851, %v2608
        %v2916 = vsub.f32 %v2852, %v2609
        %v2917 = vsub.f32 %v2853, %v2610
        %v2918 = vsub.f32 %v2854, %v2611
        %v2919 = vsub.f32 %v2855, %v2612
        %v2920 = vsub.f32 %v2856, %v2613
        %v2921 = vsub.f32 %v2857, %v2614
        %v2922 = vsub.f32 %v2858, %v2615
        %v2923 = vsub.f32 %v2859, %v2616
        %v2924 = vsub.f32 %v2860, %v2617
        %v2925 = vsub.f32 %v2861, %v2618
        %v2926 = vsub.f32 %v2862, %v2619
        %v2927 = vsub.f32 %v2863, %v2620
        %v2928 = vsub.f32 %v2864, %v2621
        %v2929 = vsub.f32 %v2865, %v2622
        %v2930 = vsub.f32 %v2866, %v2623
        %v2931 = vsub.f32 %v2867, %v2624
        %v2932 = vsub.f32 %v2868, %v2625
        %v2933 = vsub.f32 %v2869, %v2626
        %v2934 = vsub.f32 %v2870, %v2627
        %v2935 = vsub.f32 %v2871, %v2628
        %v2936 = vsub.f32 %v2872, %v2629
        %v2937 = vsub.f32 %v2873, %v2630
        %v2938 = vsub.f32 %v2874, %v2631
        %v2939 = vsub.f32 %v2875, %v2632
        %v2940 = vsub.f32 %v2876, %v2633
        %v2941 = vsub.f32 %v2877, %v2634
        %v2942 = vsub.f32 %v2878, %v2635
        %v2943 = vsub.f32 %v2879, %v2636
        %v2944 = vsub.f32 %v2880, %v2637
        %v2945 = vsub.f32 %v2881, %v2638
        %v2946 = vsub.f32 %v2882, %v2639
        %v2947 = vsub.f32 %v2883, %v2640
        %v2948 = vsub.f32 %v2884, %v2641
        %v2949 = vmul.f32 %v2885, 0.0
        %v2950 = vmul.f32 %v2886, 0.0
        %v2951 = vmul.f32 %v2887, 0.0
        %v2952 = vmul.f32 %v2888, 0.0
        %v2953 = vmul.f32 %v2889, 0.0
        %v2954 = vmul.f32 %v2890, 0.0
        %v2955 = vmul.f32 %v2891, 0.0
        %v2956 = vmul.f32 %v2892, 0.0
        %v2957 = vmul.f32 %v2893, 0.0
        %v2958 = vmul.f32 %v2894, 0.0
        %v2959 = vmul.f32 %v2895, 0.0
        %v2960 = vmul.f32 %v2896, 0.0
        %v2961 = vmul.f32 %v2897, 0.0
        %v2962 = vmul.f32 %v2898, 0.0
        %v2963 = vmul.f32 %v2899, 0.0
        %v2964 = vmul.f32 %v2900, 0.0
        %v2965 = vmul.f32 %v2901, 0.0
        %v2966 = vmul.f32 %v2902, 0.0
        %v2967 = vmul.f32 %v2903, 0.0
        %v2968 = vmul.f32 %v2904, 0.0
        %v2969 = vmul.f32 %v2905, 0.0
        %v2970 = vmul.f32 %v2906, 0.0
        %v2971 = vmul.f32 %v2907, 0.0
        %v2972 = vmul.f32 %v2908, 0.0
        %v2973 = vmul.f32 %v2909, 0.0
        %v2974 = vmul.f32 %v2910, 0.0
        %v2975 = vmul.f32 %v2911, 0.0
        %v2976 = vmul.f32 %v2912, 0.0
        %v2977 = vmul.f32 %v2913, 0.0
        %v2978 = vmul.f32 %v2914, 0.0
        %v2979 = vmul.f32 %v2915, 0.0
        %v2980 = vmul.f32 %v2916, 0.0
        %v2981 = vmul.f32 %v2917, 0.0
        %v2982 = vmul.f32 %v2918, 0.0
        %v2983 = vmul.f32 %v2919, 0.0
        %v2984 = vmul.f32 %v2920, 0.0
        %v2985 = vmul.f32 %v2921, 0.0
        %v2986 = vmul.f32 %v2922, 0.0
        %v2987 = vmul.f32 %v2923, 0.0
        %v2988 = vmul.f32 %v2924, 0.0
        %v2989 = vmul.f32 %v2925, 0.0
        %v2990 = vmul.f32 %v2926, 0.0
        %v2991 = vmul.f32 %v2927, 0.0
        %v2992 = vmul.f32 %v2928, 0.0
        %v2993 = vmul.f32 %v2929, 0.0
        %v2994 = vmul.f32 %v2930, 0.0
        %v2995 = vmul.f32 %v2931, 0.0
        %v2996 = vmul.f32 %v2932, 0.0
        %v2997 = vmul.f32 %v2933, 0.0
        %v2998 = vmul.f32 %v2934, 0.0
        %v2999 = vmul.f32 %v2935, 0.0
        %v3000 = vmul.f32 %v2936, 0.0
        %v3001 = vmul.f32 %v2937, 0.0
        %v3002 = vmul.f32 %v2938, 0.0
        %v3003 = vmul.f32 %v2939, 0.0
        %v3004 = vmul.f32 %v2940, 0.0
        %v3005 = vmul.f32 %v2941, 0.0
        %v3006 = vmul.f32 %v2942, 0.0
        %v3007 = vmul.f32 %v2943, 0.0
        %v3008 = vmul.f32 %v2944, 0.0
        %v3009 = vmul.f32 %v2945, 0.0
        %v3010 = vmul.f32 %v2946, 0.0
        %v3011 = vmul.f32 %v2947, 0.0
        %v3012 = vmul.f32 %v2948, 0.0
        %vm3013 = vcmp.gt.f32.partialorder %v2578, %v2949
        %vm3014 = vcmp.gt.f32.partialorder %v2579, %v2950
        %vm3015 = vcmp.gt.f32.partialorder %v2580, %v2951
        %vm3016 = vcmp.gt.f32.partialorder %v2581, %v2952
        %vm3017 = vcmp.gt.f32.partialorder %v2582, %v2953
        %vm3018 = vcmp.gt.f32.partialorder %v2583, %v2954
        %vm3019 = vcmp.gt.f32.partialorder %v2584, %v2955
        %vm3020 = vcmp.gt.f32.partialorder %v2585, %v2956
        %vm3021 = vcmp.gt.f32.partialorder %v2586, %v2957
        %vm3022 = vcmp.gt.f32.partialorder %v2587, %v2958
        %vm3023 = vcmp.gt.f32.partialorder %v2588, %v2959
        %vm3024 = vcmp.gt.f32.partialorder %v2589, %v2960
        %vm3025 = vcmp.gt.f32.partialorder %v2590, %v2961
        %vm3026 = vcmp.gt.f32.partialorder %v2591, %v2962
        %vm3027 = vcmp.gt.f32.partialorder %v2592, %v2963
        %vm3028 = vcmp.gt.f32.partialorder %v2593, %v2964
        %vm3029 = vcmp.gt.f32.partialorder %v2594, %v2965
        %vm3030 = vcmp.gt.f32.partialorder %v2595, %v2966
        %vm3031 = vcmp.gt.f32.partialorder %v2596, %v2967
        %vm3032 = vcmp.gt.f32.partialorder %v2597, %v2968
        %vm3033 = vcmp.gt.f32.partialorder %v2598, %v2969
        %vm3034 = vcmp.gt.f32.partialorder %v2599, %v2970
        %vm3035 = vcmp.gt.f32.partialorder %v2600, %v2971
        %vm3036 = vcmp.gt.f32.partialorder %v2601, %v2972
        %vm3037 = vcmp.gt.f32.partialorder %v2602, %v2973
        %vm3038 = vcmp.gt.f32.partialorder %v2603, %v2974
        %vm3039 = vcmp.gt.f32.partialorder %v2604, %v2975
        %vm3040 = vcmp.gt.f32.partialorder %v2605, %v2976
        %vm3041 = vcmp.gt.f32.partialorder %v2606, %v2977
        %vm3042 = vcmp.gt.f32.partialorder %v2607, %v2978
        %vm3043 = vcmp.gt.f32.partialorder %v2608, %v2979
        %vm3044 = vcmp.gt.f32.partialorder %v2609, %v2980
        %vm3045 = vcmp.gt.f32.partialorder %v2610, %v2981
        %vm3046 = vcmp.gt.f32.partialorder %v2611, %v2982
        %vm3047 = vcmp.gt.f32.partialorder %v2612, %v2983
        %vm3048 = vcmp.gt.f32.partialorder %v2613, %v2984
        %vm3049 = vcmp.gt.f32.partialorder %v2614, %v2985
        %vm3050 = vcmp.gt.f32.partialorder %v2615, %v2986
        %vm3051 = vcmp.gt.f32.partialorder %v2616, %v2987
        %vm3052 = vcmp.gt.f32.partialorder %v2617, %v2988
        %vm3053 = vcmp.gt.f32.partialorder %v2618, %v2989
        %vm3054 = vcmp.gt.f32.partialorder %v2619, %v2990
        %vm3055 = vcmp.gt.f32.partialorder %v2620, %v2991
        %vm3056 = vcmp.gt.f32.partialorder %v2621, %v2992
        %vm3057 = vcmp.gt.f32.partialorder %v2622, %v2993
        %vm3058 = vcmp.gt.f32.partialorder %v2623, %v2994
        %vm3059 = vcmp.gt.f32.partialorder %v2624, %v2995
        %vm3060 = vcmp.gt.f32.partialorder %v2625, %v2996
        %vm3061 = vcmp.gt.f32.partialorder %v2626, %v2997
        %vm3062 = vcmp.gt.f32.partialorder %v2627, %v2998
        %vm3063 = vcmp.gt.f32.partialorder %v2628, %v2999
        %vm3064 = vcmp.gt.f32.partialorder %v2629, %v3000
        %vm3065 = vcmp.gt.f32.partialorder %v2630, %v3001
        %vm3066 = vcmp.gt.f32.partialorder %v2631, %v3002
        %vm3067 = vcmp.gt.f32.partialorder %v2632, %v3003
        %vm3068 = vcmp.gt.f32.partialorder %v2633, %v3004
        %vm3069 = vcmp.gt.f32.partialorder %v2634, %v3005
        %vm3070 = vcmp.gt.f32.partialorder %v2635, %v3006
        %vm3071 = vcmp.gt.f32.partialorder %v2636, %v3007
        %vm3072 = vcmp.gt.f32.partialorder %v2637, %v3008
        %vm3073 = vcmp.gt.f32.partialorder %v2638, %v3009
        %vm3074 = vcmp.gt.f32.partialorder %v2639, %v3010
        %vm3075 = vcmp.gt.f32.partialorder %v2640, %v3011
        %vm3076 = vcmp.gt.f32.partialorder %v2641, %v3012
        %vm3077 = vmpackc.low %vm3015, %vm3013
        %vm3078 = vmpackc.low %vm3019, %vm3017
        %vm3079 = vmpackc.even %vm3078, %vm3077
        %vm3080 = vmpackc.low %vm3016, %vm3014
        %vm3081 = vmpackc.low %vm3020, %vm3018
        %vm3082 = vmpackc.even %vm3081, %vm3080
        %vm3083 = vmpackc.low %vm3023, %vm3021
        %vm3084 = vmpackc.low %vm3027, %vm3025
        %vm3085 = vmpackc.even %vm3084, %vm3083
        %vm3086 = vmpackc.low %vm3024, %vm3022
        %vm3087 = vmpackc.low %vm3028, %vm3026
        %vm3088 = vmpackc.even %vm3087, %vm3086
        %vm3089 = vmpackc.low %vm3031, %vm3029
        %vm3090 = vmpackc.low %vm3035, %vm3033
        %vm3091 = vmpackc.even %vm3090, %vm3089
        %vm3092 = vmpackc.low %vm3032, %vm3030
        %vm3093 = vmpackc.low %vm3036, %vm3034
        %vm3094 = vmpackc.even %vm3093, %vm3092
        %vm3095 = vmpackc.low %vm3039, %vm3037
        %vm3096 = vmpackc.low %vm3043, %vm3041
        %vm3097 = vmpackc.even %vm3096, %vm3095
        %vm3098 = vmpackc.low %vm3040, %vm3038
        %vm3099 = vmpackc.low %vm3044, %vm3042
        %vm3100 = vmpackc.even %vm3099, %vm3098
        %vm3101 = vmpackc.low %vm3047, %vm3045
        %vm3102 = vmpackc.low %vm3051, %vm3049
        %vm3103 = vmpackc.even %vm3102, %vm3101
        %vm3104 = vmpackc.low %vm3048, %vm3046
        %vm3105 = vmpackc.low %vm3052, %vm3050
        %vm3106 = vmpackc.even %vm3105, %vm3104
        %vm3107 = vmpackc.low %vm3055, %vm3053
        %vm3108 = vmpackc.low %vm3059, %vm3057
        %vm3109 = vmpackc.even %vm3108, %vm3107
        %vm3110 = vmpackc.low %vm3056, %vm3054
        %vm3111 = vmpackc.low %vm3060, %vm3058
        %vm3112 = vmpackc.even %vm3111, %vm3110
        %vm3113 = vmpackc.low %vm3063, %vm3061
        %vm3114 = vmpackc.low %vm3067, %vm3065
        %vm3115 = vmpackc.even %vm3114, %vm3113
        %vm3116 = vmpackc.low %vm3064, %vm3062
        %vm3117 = vmpackc.low %vm3068, %vm3066
        %vm3118 = vmpackc.even %vm3117, %vm3116
        %vm3119 = vmpackc.low %vm3071, %vm3069
        %vm3120 = vmpackc.low %vm3075, %vm3073
        %vm3121 = vmpackc.even %vm3120, %vm3119
        %vm3122 = vmpackc.low %vm3072, %vm3070
        %vm3123 = vmpackc.low %vm3076, %vm3074
        %vm3124 = vmpackc.even %vm3123, %vm3122
        %v3125 = vsel %vm3079, 16843009, 0
        %v3126 = vsel %vm3082, 16843009, 0
        %v3127 = vsel %vm3085, 16843009, 0
        %v3128 = vsel %vm3088, 16843009, 0
        %v3129 = vsel %vm3091, 16843009, 0
        %v3130 = vsel %vm3094, 16843009, 0
        %v3131 = vsel %vm3097, 16843009, 0
        %v3132 = vsel %vm3100, 16843009, 0
        %v3133 = vsel %vm3103, 16843009, 0
        %v3134 = vsel %vm3106, 16843009, 0
        %v3135 = vsel %vm3109, 16843009, 0
        %v3136 = vsel %vm3112, 16843009, 0
        %v3137 = vsel %vm3115, 16843009, 0
        %v3138 = vsel %vm3118, 16843009, 0
        %v3139 = vsel %vm3121, 16843009, 0
        %v3140 = vsel %vm3124, 16843009, 0
        %3141 = vst [vmem:[%s411] sm:$0xff] %v3125
        %3142 = vst [vmem:[%s411 + $0x8] sm:$0xff] %v3126
        %3143 = vst [vmem:[%s411 + $0x10] sm:$0xff] %v3127
        %3144 = vst [vmem:[%s411 + $0x18] sm:$0xff] %v3128
        %3145 = vst [vmem:[%s411 + $0x20] sm:$0xff] %v3129
        %3146 = vst [vmem:[%s411 + $0x28] sm:$0xff] %v3130
        %3147 = vst [vmem:[%s411 + $0x30] sm:$0xff] %v3131
        %3148 = vst [vmem:[%s411 + $0x38] sm:$0xff] %v3132
        %3149 = vst [vmem:[%s411 + $0x40] sm:$0xff] %v3133
        %3150 = vst [vmem:[%s411 + $0x48] sm:$0xff] %v3134
        %3151 = vst [vmem:[%s411 + $0x50] sm:$0xff] %v3135
        %3152 = vst [vmem:[%s411 + $0x58] sm:$0xff] %v3136
        %3153 = vst [vmem:[%s411 + $0x60] sm:$0xff] %v3137
        %3154 = vst [vmem:[%s411 + $0x68] sm:$0xff] %v3138
        %3155 = vst [vmem:[%s411 + $0x70] sm:$0xff] %v3139
        %3156 = vst [vmem:[%s411 + $0x78] sm:$0xff] %v3140
        %s3157 = sand.u32 %s190, 1
        %s3158 = scalar_lea.sflag [#allocation3], %s3157
        %s3159 = sand.u32 %s190, 1
        %s3160 = smul.addr %s3159, 16
        %s3161 = scalar_lea.vmem [#allocation2], %s3160
        %s3162 = sand.u32 %s25, 1
        %s3163 = scalar_lea.sflag [#allocation5], %s3162
        %s3164 = sand.u32 %s218, 1
        %s3165 = smul.addr %s3164, 8
        %s3166 = scalar_lea.vmem [#allocation4], %s3165
        %s3167 = sand.u32 %s25, 1
        %s3168 = scalar_lea.sflag [#allocation5], %s3167
        %s3169 = sand.u32 %s248, 1
        %s3170 = smul.addr %s3169, 128
        %s3171 = scalar_lea.vmem [#allocation6], %s3170
        // Predicated region
        $region45: #{tpu_custom_call.1} parent=39 // pred_check
          %p3172 = pneg %p200
        $region46: #{tpu_custom_call.1} parent=39 // pred_check_branch
          %3174 = sbr.rel (%p3172) target = $region48
        $region47: #{tpu_custom_call.1} parent=39 // pred_region
          %s3175 = smul.u32 2, %s31
          %s3177 = ssub.s32 256, 256
          %3178 = vsyncadd %s3158, %s3177
          %s3179 = smul.addr %s30, 4
          %s3180 = sadd.s32 %s3175, %s3179
          %s3181 = smul.addr %s3180, 128
          %s3182 = scalar_lea.hbm %s5, %s3181
          %s3184 = sshll.u32 %s3161, 4
          %s3185 = int_to_ptr.vmem [resolvable:$true] %s3184
          %3187 = dma.vmem_to_hbm [thread:$0]  %s3185, 256, %s3182, %s3158
        $region48: #{tpu_custom_call.1} parent=39 // pred_fallthru
          _
        // Predicated region
        $region49: #{tpu_custom_call.1} parent=39 // pred_check
          %p3188 = pneg %p228
        $region50: #{tpu_custom_call.1} parent=39 // pred_check_branch
          %3190 = sbr.rel (%p3188) target = $region52
        $region51: #{tpu_custom_call.1} parent=39 // pred_region
          %s3191 = smul.u32 2, %s31
          %s3193 = ssub.s32 128, 128
          %3194 = vsyncadd %s3163, %s3193
          %s3195 = smul.addr %s30, 4
          %s3196 = sadd.s32 %s3191, %s3195
          %s3197 = smul.addr %s3196, 64
          %s3198 = scalar_lea.hbm %s6, %s3197
          %s3200 = sshll.u32 %s3166, 4
          %s3201 = int_to_ptr.vmem [resolvable:$true] %s3200
          %3203 = dma.vmem_to_hbm [thread:$0]  %s3201, 128, %s3198, %s3163
        $region52: #{tpu_custom_call.1} parent=39 // pred_fallthru
          _
        // Predicated region
        $region53: #{tpu_custom_call.1} parent=39 // pred_check
          %p3204 = pneg %p258
        $region54: #{tpu_custom_call.1} parent=39 // pred_check_branch
          %3206 = sbr.rel (%p3204) target = $region56
        $region55: #{tpu_custom_call.1} parent=39 // pred_region
          %s3207 = smul.u32 8, %s32
          %s3208 = smul.u32 2, %s31
          %s3210 = ssub.s32 2048, 2048
          %3211 = vsyncadd %s3168, %s3210
          %s3212 = smul.addr %s3207, 4
          %s3213 = sadd.s32 %s3208, %s3212
          %s3214 = smul.addr %s30, 64
          %s3215 = sadd.s32 %s3213, %s3214
          %s3216 = smul.addr %s3215, 128
          %s3217 = scalar_lea.hbm %s7, %s3216
          %s3218 = sshll.u32 %s3171, 4
          %s3219 = int_to_ptr.vmem [resolvable:$true] %s3218
          %3224 = dma.vmem_to_hbm [thread:$0]  %s3219, 2048, %s3217, %s3168, 256, 512, 16
        $region56: #{tpu_custom_call.1} parent=39 // pred_fallthru
          _
      $region40: #{tpu_custom_call.1} parent=5 // pred_fallthru
        _
      %p3225 = scmp.le.s32.totalorder 2, %s20
      // Predicated region
      $region57: #{tpu_custom_call.1} parent=5 // pred_check
        %p3226 = pneg %p3225
      $region58: #{tpu_custom_call.1} parent=5 // pred_check_branch
        %3228 = sbr.rel (%p3226) target = $region60
      $region59: #{tpu_custom_call.1} parent=5 // pred_region
        %s3229 = ssub.s32 %s20, 2
        // Predicated region
        $region61: #{tpu_custom_call.1} parent=59 // pred_check
          %p3230 = pneg %p206
        $region62: #{tpu_custom_call.1} parent=59 // pred_check_branch
          %3232 = sbr.rel (%p3230) target = $region64
        $region63: #{tpu_custom_call.1} parent=59 // pred_region
          %s3233 = sand.u32 %s191, 1
          %s3234 = scalar_lea.sflag [#allocation3], %s3233
          %s3235 = sand.u32 %s191, 1
          %s3236 = smul.addr %s3235, 16
          %s3237 = scalar_lea.vmem [#allocation2], %s3236
          %3238 = dma.done %s3234, 256
        $region64: #{tpu_custom_call.1} parent=59 // pred_fallthru
          _
        // Predicated region
        $region65: #{tpu_custom_call.1} parent=59 // pred_check
          %p3239 = pneg %p234
        $region66: #{tpu_custom_call.1} parent=59 // pred_check_branch
          %3241 = sbr.rel (%p3239) target = $region68
        $region67: #{tpu_custom_call.1} parent=59 // pred_region
          %s3242 = sand.u32 %s26, 1
          %s3243 = scalar_lea.sflag [#allocation5], %s3242
          %s3244 = sand.u32 %s219, 1
          %s3245 = smul.addr %s3244, 8
          %s3246 = scalar_lea.vmem [#allocation4], %s3245
          %3247 = dma.done %s3243, 128
        $region68: #{tpu_custom_call.1} parent=59 // pred_fallthru
          _
        // Predicated region
        $region69: #{tpu_custom_call.1} parent=59 // pred_check
          %p3248 = pneg %p264
        $region70: #{tpu_custom_call.1} parent=59 // pred_check_branch
          %3250 = sbr.rel (%p3248) target = $region72
        $region71: #{tpu_custom_call.1} parent=59 // pred_region
          %s3251 = sand.u32 %s26, 1
          %s3252 = scalar_lea.sflag [#allocation5], %s3251
          %s3253 = sand.u32 %s249, 1
          %s3254 = smul.addr %s3253, 128
          %s3255 = scalar_lea.vmem [#allocation6], %s3254
          %3256 = dma.done %s3252, 2048
        $region72: #{tpu_custom_call.1} parent=59 // pred_fallthru
          _
      $region60: #{tpu_custom_call.1} parent=5 // pred_fallthru
        _
    $region6: #{tpu_custom_call.1} parent=1 // loop_footer
      %s24 = sadd.s32 1, %s20
    $region7: #{tpu_custom_call.1} parent=1 // loop_footer_branch
      %19 = sbr.rel target = $region3
    $region8: #{tpu_custom_call.1} parent=1 // loop_exit
      _
    %3257 = vsyncpa [#allocation3], 1
    %s3258 = scalar_lea.sflag [#allocation3], 1
    %3259 = vsyncpa %s3258, 1
    %3260 = vsyncpa [#allocation5], 1
    %s3261 = scalar_lea.sflag [#allocation5], 1
    %3262 = vsyncpa %s3261, 1

</llo_original>
